<compile_context>
chip_gen: v6e
topology: v6e:2x2x1
jax: 0.10.0
libtpu: 0.0.40
codegen_flags: <defaults>
</compile_context>

<pallas_src>
import functools
import math

import jax
import jax.numpy as jnp
import numpy as np
from jax.experimental import pallas as pl
from jax.experimental.pallas import tpu as pltpu


# ----------------------------------------------------------------------------
# Fused kernel: 2-layer LSTM recurrence (unrolled time loop, one matmul/step)
# + fused eta/ksi head + elementwise output.
# ----------------------------------------------------------------------------
def _lstm_opt_kernel(x_ref,       # (B, T*D)   f32  flattened input (head path)
                     x0_ref,      # (B, T*4H)  f32  hoisted layer-0 proj + b0 (lane-dense)
                     w_big_ref,   # (2H, 8H)   bf16 fused recurrent weights
                     b1_ref,      # (1, 4H)    f32
                     head_w_ref,  # (H, P)     f32  [w_eta | w_ksi | 0-pad]
                     head_b_ref,  # (1, P)     f32
                     y_ref,       # (B, T*D)   f32  output
                     lhs_ref,     # (B, 2H)    bf16 scratch: [h0(t) | h1(t-1)]
                     *, hidden_dim, input_dim, seq_len, tau_s):
    H = hidden_dim
    D = input_dim
    T = seq_len
    B = x_ref.shape[0]
    G = 4 * H

    def lstm_cell(gates, c_prev):
        # Two full-vreg EUP passes, then cheap static lane slices.
        sig = jax.nn.sigmoid(gates)          # (B, 4H)
        tah = jnp.tanh(gates)                # (B, 4H)
        i = sig[:, 0 * H:1 * H]
        f = sig[:, 1 * H:2 * H]
        g = tah[:, 2 * H:3 * H]
        o = sig[:, 3 * H:4 * H]
        c_new = f * c_prev + i * g
        h_new = o * jnp.tanh(c_new)
        return h_new, c_new

    # Loop-invariant loads / broadcasts hoisted out of the unrolled recurrence
    # (JAX does not CSE the per-step re-loads / broadcast_in_dim otherwise).
    w_big = w_big_ref[...]                                    # (2H, 8H) bf16
    b1 = jnp.broadcast_to(b1_ref[...], (B, G))                # (B, 4H)  f32

    zH = jnp.zeros((B, H), jnp.float32)
    c0 = zH
    c1 = zH
    h1 = zH
    rec0 = jnp.zeros((B, G), jnp.float32)          # h0(-1) @ W_hh0 = 0
    lhs_ref[...] = jnp.zeros((B, 2 * H), jnp.bfloat16)   # h1(-1) = 0

    # Fully unrolled (T is small); static, 128-lane-aligned x0 slices.
    for t in range(T):
        # Layer 0: hoisted input projection + recurrent term from prev. step.
        g0 = x0_ref[:, t * G:(t + 1) * G] + rec0
        h0, c0 = lstm_cell(g0, c0)
        # Single fused recurrent matmul: [h0(t) | h1(t-1)] @ W_big.
        lhs_ref[:, 0:H] = h0.astype(jnp.bfloat16)
        gall = jnp.dot(lhs_ref[...], w_big,
                       preferred_element_type=jnp.float32)    # (B, 8H)
        rec0 = gall[:, 0:G]                 # = h0(t) @ W_hh0, used at t+1
        g1 = gall[:, G:2 * G] + b1          # layer-1 gates at t
        h1, c1 = lstm_cell(g1, c1)
        lhs_ref[:, H:2 * H] = h1.astype(jnp.bfloat16)

    # Fused eta/ksi head (single lane-dense f32 matmul) + elementwise output.
    head = (jnp.dot(h1, head_w_ref[...], preferred_element_type=jnp.float32)
            + head_b_ref[...])                               # (B, P)
    eta = jax.nn.sigmoid(head[:, 0:1])                       # (B, 1)
    ksi = head[:, 1:1 + D]                                   # (B, D)
    sk = jnp.exp(-(eta + tau_s)) * ksi                       # (B, D)
    sk_t = jnp.concatenate([sk] * T, axis=-1)                # (B, T*D) lane tile
    y_ref[...] = jnp.abs(x_ref[...]) * sk_t


# ----------------------------------------------------------------------------
# Wrapper
# ----------------------------------------------------------------------------
def lstm_opt_forward(x, params, *, tau_s):
    B, T, C, F = x.shape
    D = C * F
    H = params["hidden_dim"]
    G = 4 * H

    # Lane-alignment assumptions (see correctness notes in the review).
    assert (T * D) % 128 == 0, "T*D must be a multiple of 128 for lane-dense I/O"
    assert G % 128 == 0, "4*H must be a multiple of 128 for lane-aligned x0 slices"
    assert 1 + D <= 128, "fused head assumes eta+ksi fit in one 128-lane tile"

    x_flat = x.reshape(B, T, D).astype(jnp.float32)           # (B, T, D)
    x_2d = x_flat.reshape(B, T * D)                           # lane-dense head I/O

    # Hoisted, time-batched layer-0 input projection (+ bias), lane-dense.
    x0 = (jnp.einsum("btd,dk->btk", x_flat, params["w_ih0"].T,
                     precision=jax.lax.Precision.HIGHEST)
          + params["b0"][0]).reshape(B, T * G)                # (B, T*4H) f32

    # Fused per-step recurrent RHS: [[W_hh0, W_ih1], [0, W_hh1]]  (2H, 8H) bf16.
    left = jnp.concatenate([params["w_hh0"].T,
                            jnp.zeros((H, G), jnp.float32)], axis=0)     # (2H, 4H)
    right = jnp.concatenate([params["w_ih1"].T, params["w_hh1"].T], axis=0)
    w_big = jnp.concatenate([left, right], axis=1).astype(jnp.bfloat16)  # (2H, 8H)

    # Fused head weights: [w_eta | w_ksi | 0-pad] -> (H, P), P = ceil128(1+D).
    # Head stays f32 (runs once; accuracy-sensitive through exp(-eta)).
    P = ((1 + D + 127) // 128) * 128
    head_w = jnp.concatenate(
        [params["w_eta"].T, params["w_ksi"].T,
         jnp.zeros((H, P - 1 - D), jnp.float32)], axis=1)                # (H, P)
    head_b = jnp.concatenate(
        [params["b_eta"], params["b_ksi"],
         jnp.zeros((1, P - 1 - D), jnp.float32)], axis=1)                # (1, P)

    kernel = functools.partial(_lstm_opt_kernel, hidden_dim=H, input_dim=D,
                               seq_len=T, tau_s=tau_s)
    y2d = pl.pallas_call(
        kernel,
        out_shape=jax.ShapeDtypeStruct((B, T * D), jnp.float32),
        grid=(1,),
        in_specs=[
            pl.BlockSpec((B, T * D), lambda i: (0, 0)),
            pl.BlockSpec((B, T * G), lambda i: (0, 0)),
            pl.BlockSpec((2 * H, 2 * G), lambda i: (0, 0)),
            pl.BlockSpec((1, G), lambda i: (0, 0)),
            pl.BlockSpec((H, P), lambda i: (0, 0)),
            pl.BlockSpec((1, P), lambda i: (0, 0)),
        ],
        out_specs=pl.BlockSpec((B, T * D), lambda i: (0, 0)),
        scratch_shapes=[pltpu.VMEM((B, 2 * H), jnp.bfloat16)],
        compiler_params=pltpu.CompilerParams(
            dimension_semantics=("arbitrary",)),
    )(x_2d, x0, w_big, params["b1"], head_w, head_b)

    return y2d.reshape(B, T, C, F)


# ----------------------------------------------------------------------------
# Deterministic parameter init (PyTorch-style U(-1/sqrt(H), 1/sqrt(H)))
# ----------------------------------------------------------------------------
def init_params(key, input_dim, hidden_dim):
    H = hidden_dim
    stdv = 1.0 / math.sqrt(H)
    keys = jax.random.split(key, 12)
    u = lambda k, shape: jax.random.uniform(k, shape, jnp.float32, -stdv, stdv)
    p = {"hidden_dim": H}
    # LSTM layer 0 (input_dim -> H), layer 1 (H -> H); gate order (i, f, g, o)
    p["w_ih0"] = u(keys[0], (4 * H, input_dim))
    p["w_hh0"] = u(keys[1], (4 * H, H))
    p["b0"] = (u(keys[2], (4 * H,)) + u(keys[3], (4 * H,))).reshape(1, 4 * H)
    p["w_ih1"] = u(keys[4], (4 * H, H))
    p["w_hh1"] = u(keys[5], (4 * H, H))
    p["b1"] = (u(keys[6], (4 * H,)) + u(keys[7], (4 * H,))).reshape(1, 4 * H)
    # eta head: Linear(H, 1) + Sigmoid ; ksi head: Linear(H, input_dim)
    p["w_eta"] = u(keys[8], (1, H))
    p["b_eta"] = u(keys[9], (1,)).reshape(1, 1)
    p["w_ksi"] = u(keys[10], (input_dim, H))
    p["b_ksi"] = u(keys[11], (input_dim,)).reshape(1, input_dim)
    return p


# ----------------------------------------------------------------------------
# Pure-JAX reference (mirrors the PyTorch forward) for correctness check
# ----------------------------------------------------------------------------
def ref_forward(x, p, tau_s):
    B, T, C, F = x.shape
    D = C * F
    H = p["hidden_dim"]
    xf = x.reshape(B, T, D).astype(jnp.float32)
    hp = jax.lax.Precision.HIGHEST

    def run_layer(seq, w_ih, w_hh, b):  # seq: (T, B, in)
        def step(carry, x_t):
            h, c = carry
            gates = (jnp.dot(x_t, w_ih.T, precision=hp)
                     + jnp.dot(h, w_hh.T, precision=hp) + b[0])
            i, f, g, o = jnp.split(gates, 4, axis=-1)
            i, f, o = jax.nn.sigmoid(i), jax.nn.sigmoid(f), jax.nn.sigmoid(o)
            g = jnp.tanh(g)
            c = f * c + i * g
            h = o * jnp.tanh(c)
            return (h, c), h
        init = (jnp.zeros((B, H), jnp.float32), jnp.zeros((B, H), jnp.float32))
        (h, _), outs = jax.lax.scan(step, init, seq)
        return outs, h

    seq = jnp.transpose(xf, (1, 0, 2))
    outs0, _ = run_layer(seq, p["w_ih0"], p["w_hh0"], p["b0"])
    _, h_last = run_layer(outs0, p["w_ih1"], p["w_hh1"], p["b1"])
    eta = jax.nn.sigmoid(jnp.dot(h_last, p["w_eta"].T, precision=hp) + p["b_eta"][0])
    ksi = jnp.dot(h_last, p["w_ksi"].T, precision=hp) + p["b_ksi"][0]
    y = jnp.abs(xf) * jnp.exp(-(eta + tau_s))[:, None, :] * ksi[:, None, :]
    return y.reshape(B, T, C, F)


if __name__ == "__main__":
    B, T, C, F = 2, 8, 4, 16     # batch, seq, in_channels, feature_dim
    H, L = 32, 2                 # hidden_dim, layer_num
    tau_s = 0.5

    key = jax.random.PRNGKey(0)
    kx, kp = jax.random.split(key)
    x = jax.random.normal(kx, (B, T, C, F), dtype=jnp.float32)
    params = init_params(kp, C * F, H)

    y = jax.block_until_ready(lstm_opt_forward(x, params, tau_s=tau_s))
    y_ref = ref_forward(x, params, tau_s)
    # bf16 recurrent matmul operands -> relaxed (standard bf16) tolerances.
    np.testing.assert_allclose(np.asarray(y), np.asarray(y_ref),
                               rtol=2e-2, atol=5e-3)
    print("KERNEL_OK")
</pallas_src>

<mosaic_0001>
module attributes {stable_mosaic.version = 11 : i64} {
  func.func @_lstm_opt_kernel(%arg0: i32, %arg1: memref<2x512xf32, #tpu.memory_space<vmem>>, %arg2: memref<2x1024xf32, #tpu.memory_space<vmem>>, %arg3: memref<64x256xbf16, #tpu.memory_space<vmem>>, %arg4: memref<1x128xf32, #tpu.memory_space<vmem>>, %arg5: memref<32x128xf32, #tpu.memory_space<vmem>>, %arg6: memref<1x128xf32, #tpu.memory_space<vmem>>, %arg7: memref<2x512xf32, #tpu.memory_space<vmem>>, %arg8: memref<2x64xbf16, #tpu.memory_space<vmem>>) attributes {dimension_semantics = [#tpu.dimension_semantics<arbitrary>], iteration_bounds = array<i64: 1>, scalar_prefetch = 0 : i64, scratch_operands = 1 : i64, tpu.core_type = #tpu.core_type<tc>, window_params = [{pipeline_mode = #tpu.pipeline_mode<synchronous>, transform_indices = @transform_0, window_bounds = array<i64: 2, 512>}, {pipeline_mode = #tpu.pipeline_mode<synchronous>, transform_indices = @transform_1, window_bounds = array<i64: 2, 1024>}, {pipeline_mode = #tpu.pipeline_mode<synchronous>, transform_indices = @transform_2, window_bounds = array<i64: 64, 256>}, {pipeline_mode = #tpu.pipeline_mode<synchronous>, transform_indices = @transform_3, window_bounds = array<i64: 1, 128>}, {pipeline_mode = #tpu.pipeline_mode<synchronous>, transform_indices = @transform_4, window_bounds = array<i64: 32, 128>}, {pipeline_mode = #tpu.pipeline_mode<synchronous>, transform_indices = @transform_5, window_bounds = array<i64: 1, 128>}, {pipeline_mode = #tpu.pipeline_mode<synchronous>, transform_indices = @transform_6, window_bounds = array<i64: 2, 512>}]} {
    %c0 = arith.constant 0 : index
    %c0_0 = arith.constant 0 : index
    %0 = vector.load %arg3[%c0, %c0_0] : memref<64x256xbf16, #tpu.memory_space<vmem>>, vector<64x256xbf16>
    %c0_1 = arith.constant 0 : index
    %c0_2 = arith.constant 0 : index
    %1 = vector.load %arg4[%c0_1, %c0_2] : memref<1x128xf32, #tpu.memory_space<vmem>>, vector<1x128xf32>
    %2 = vector.shape_cast %1 : vector<1x128xf32> to vector<1x128xf32>
    %3 = vector.broadcast %2 : vector<1x128xf32> to vector<2x128xf32>
    %cst = arith.constant 0.000000e+00 : f32
    %4 = vector.broadcast %cst : f32 to vector<2x32xf32>
    %cst_3 = arith.constant 0.000000e+00 : f32
    %5 = vector.broadcast %cst_3 : f32 to vector<2x128xf32>
    %cst_4 = arith.constant 0.000000e+00 : bf16
    %6 = vector.broadcast %cst_4 : bf16 to vector<2x64xbf16>
    %c0_5 = arith.constant 0 : index
    %c0_6 = arith.constant 0 : index
    %7 = vector.load %arg8[%c0_5, %c0_6] : memref<2x64xbf16, #tpu.memory_space<vmem>>, vector<2x64xbf16>
    tpu.vector_store %arg8[%c0_5, %c0_6], %6 {strides = array<i32>} : memref<2x64xbf16, #tpu.memory_space<vmem>>, vector<2x64xbf16>,
    %c0_7 = arith.constant 0 : index
    %c0_8 = arith.constant 0 : index
    %8 = vector.load %arg2[%c0_7, %c0_8] : memref<2x1024xf32, #tpu.memory_space<vmem>>, vector<2x128xf32>
    %9 = arith.addf %8, %5 : vector<2x128xf32>
    %10 = arith.negf %9 : vector<2x128xf32>
    %11 = math.exp %10 : vector<2x128xf32>
    %cst_9 = arith.constant 1.000000e+00 : f32
    %12 = vector.broadcast %cst_9 : f32 to vector<2x128xf32>
    %13 = arith.addf %12, %11 : vector<2x128xf32>
    %14 = arith.divf %12, %13 : vector<2x128xf32>
    %15 = math.tanh %9 : vector<2x128xf32>
    %16 = vector.extract_strided_slice %14 {offsets = [0, 0], sizes = [2, 32], strides = [1, 1]} : vector<2x128xf32> to vector<2x32xf32>
    %17 = vector.extract_strided_slice %14 {offsets = [0, 32], sizes = [2, 32], strides = [1, 1]} : vector<2x128xf32> to vector<2x32xf32>
    %18 = vector.extract_strided_slice %15 {offsets = [0, 64], sizes = [2, 32], strides = [1, 1]} : vector<2x128xf32> to vector<2x32xf32>
    %19 = vector.extract_strided_slice %14 {offsets = [0, 96], sizes = [2, 32], strides = [1, 1]} : vector<2x128xf32> to vector<2x32xf32>
    %20 = arith.mulf %17, %4 : vector<2x32xf32>
    %21 = arith.mulf %16, %18 : vector<2x32xf32>
    %22 = arith.addf %20, %21 : vector<2x32xf32>
    %23 = math.tanh %22 : vector<2x32xf32>
    %24 = arith.mulf %19, %23 : vector<2x32xf32>
    %25 = arith.truncf %24 : vector<2x32xf32> to vector<2x32xbf16>
    %c0_10 = arith.constant 0 : index
    %c0_11 = arith.constant 0 : index
    %26 = vector.load %arg8[%c0_10, %c0_11] : memref<2x64xbf16, #tpu.memory_space<vmem>>, vector<2x32xbf16>
    tpu.vector_store %arg8[%c0_10, %c0_11], %25 {strides = array<i32>} : memref<2x64xbf16, #tpu.memory_space<vmem>>, vector<2x32xbf16>,
    %c0_12 = arith.constant 0 : index
    %c0_13 = arith.constant 0 : index
    %27 = vector.load %arg8[%c0_12, %c0_13] : memref<2x64xbf16, #tpu.memory_space<vmem>>, vector<2x64xbf16>
    %cst_14 = arith.constant dense<0.000000e+00> : vector<2x256xf32>
    %28 = tpu.matmul %27, %0, %cst_14 {dimension_numbers = #tpu.dot_dimension_numbers<[1], [0], [0], [1], [0, 0, 1, 1], [], []>} : vector<2x64xbf16>, vector<64x256xbf16>, vector<2x256xf32> -> vector<2x256xf32>
    %29 = vector.extract_strided_slice %28 {offsets = [0, 0], sizes = [2, 128], strides = [1, 1]} : vector<2x256xf32> to vector<2x128xf32>
    %30 = vector.extract_strided_slice %28 {offsets = [0, 128], sizes = [2, 128], strides = [1, 1]} : vector<2x256xf32> to vector<2x128xf32>
    %31 = arith.addf %30, %3 : vector<2x128xf32>
    %32 = arith.negf %31 : vector<2x128xf32>
    %33 = math.exp %32 : vector<2x128xf32>
    %cst_15 = arith.constant 1.000000e+00 : f32
    %34 = vector.broadcast %cst_15 : f32 to vector<2x128xf32>
    %35 = arith.addf %34, %33 : vector<2x128xf32>
    %36 = arith.divf %34, %35 : vector<2x128xf32>
    %37 = math.tanh %31 : vector<2x128xf32>
    %38 = vector.extract_strided_slice %36 {offsets = [0, 0], sizes = [2, 32], strides = [1, 1]} : vector<2x128xf32> to vector<2x32xf32>
    %39 = vector.extract_strided_slice %36 {offsets = [0, 32], sizes = [2, 32], strides = [1, 1]} : vector<2x128xf32> to vector<2x32xf32>
    %40 = vector.extract_strided_slice %37 {offsets = [0, 64], sizes = [2, 32], strides = [1, 1]} : vector<2x128xf32> to vector<2x32xf32>
    %41 = vector.extract_strided_slice %36 {offsets = [0, 96], sizes = [2, 32], strides = [1, 1]} : vector<2x128xf32> to vector<2x32xf32>
    %42 = arith.mulf %39, %4 : vector<2x32xf32>
    %43 = arith.mulf %38, %40 : vector<2x32xf32>
    %44 = arith.addf %42, %43 : vector<2x32xf32>
    %45 = math.tanh %44 : vector<2x32xf32>
    %46 = arith.mulf %41, %45 : vector<2x32xf32>
    %47 = arith.truncf %46 : vector<2x32xf32> to vector<2x32xbf16>
    %c0_16 = arith.constant 0 : index
    %c32 = arith.constant 32 : index
    %48 = vector.load %arg8[%c0_16, %c32] : memref<2x64xbf16, #tpu.memory_space<vmem>>, vector<2x32xbf16>
    tpu.vector_store %arg8[%c0_16, %c32], %47 {strides = array<i32>} : memref<2x64xbf16, #tpu.memory_space<vmem>>, vector<2x32xbf16>,
    %c0_17 = arith.constant 0 : index
    %c128 = arith.constant 128 : index
    %49 = vector.load %arg2[%c0_17, %c128] : memref<2x1024xf32, #tpu.memory_space<vmem>>, vector<2x128xf32>
    %50 = arith.addf %49, %29 : vector<2x128xf32>
    %51 = arith.negf %50 : vector<2x128xf32>
    %52 = math.exp %51 : vector<2x128xf32>
    %cst_18 = arith.constant 1.000000e+00 : f32
    %53 = vector.broadcast %cst_18 : f32 to vector<2x128xf32>
    %54 = arith.addf %53, %52 : vector<2x128xf32>
    %55 = arith.divf %53, %54 : vector<2x128xf32>
    %56 = math.tanh %50 : vector<2x128xf32>
    %57 = vector.extract_strided_slice %55 {offsets = [0, 0], sizes = [2, 32], strides = [1, 1]} : vector<2x128xf32> to vector<2x32xf32>
    %58 = vector.extract_strided_slice %55 {offsets = [0, 32], sizes = [2, 32], strides = [1, 1]} : vector<2x128xf32> to vector<2x32xf32>
    %59 = vector.extract_strided_slice %56 {offsets = [0, 64], sizes = [2, 32], strides = [1, 1]} : vector<2x128xf32> to vector<2x32xf32>
    %60 = vector.extract_strided_slice %55 {offsets = [0, 96], sizes = [2, 32], strides = [1, 1]} : vector<2x128xf32> to vector<2x32xf32>
    %61 = arith.mulf %58, %22 : vector<2x32xf32>
    %62 = arith.mulf %57, %59 : vector<2x32xf32>
    %63 = arith.addf %61, %62 : vector<2x32xf32>
    %64 = math.tanh %63 : vector<2x32xf32>
    %65 = arith.mulf %60, %64 : vector<2x32xf32>
    %66 = arith.truncf %65 : vector<2x32xf32> to vector<2x32xbf16>
    %c0_19 = arith.constant 0 : index
    %c0_20 = arith.constant 0 : index
    %67 = vector.load %arg8[%c0_19, %c0_20] : memref<2x64xbf16, #tpu.memory_space<vmem>>, vector<2x32xbf16>
    tpu.vector_store %arg8[%c0_19, %c0_20], %66 {strides = array<i32>} : memref<2x64xbf16, #tpu.memory_space<vmem>>, vector<2x32xbf16>,
    %c0_21 = arith.constant 0 : index
    %c0_22 = arith.constant 0 : index
    %68 = vector.load %arg8[%c0_21, %c0_22] : memref<2x64xbf16, #tpu.memory_space<vmem>>, vector<2x64xbf16>
    %cst_23 = arith.constant dense<0.000000e+00> : vector<2x256xf32>
    %69 = tpu.matmul %68, %0, %cst_23 {dimension_numbers = #tpu.dot_dimension_numbers<[1], [0], [0], [1], [0, 0, 1, 1], [], []>} : vector<2x64xbf16>, vector<64x256xbf16>, vector<2x256xf32> -> vector<2x256xf32>
    %70 = vector.extract_strided_slice %69 {offsets = [0, 0], sizes = [2, 128], strides = [1, 1]} : vector<2x256xf32> to vector<2x128xf32>
    %71 = vector.extract_strided_slice %69 {offsets = [0, 128], sizes = [2, 128], strides = [1, 1]} : vector<2x256xf32> to vector<2x128xf32>
    %72 = arith.addf %71, %3 : vector<2x128xf32>
    %73 = arith.negf %72 : vector<2x128xf32>
    %74 = math.exp %73 : vector<2x128xf32>
    %cst_24 = arith.constant 1.000000e+00 : f32
    %75 = vector.broadcast %cst_24 : f32 to vector<2x128xf32>
    %76 = arith.addf %75, %74 : vector<2x128xf32>
    %77 = arith.divf %75, %76 : vector<2x128xf32>
    %78 = math.tanh %72 : vector<2x128xf32>
    %79 = vector.extract_strided_slice %77 {offsets = [0, 0], sizes = [2, 32], strides = [1, 1]} : vector<2x128xf32> to vector<2x32xf32>
    %80 = vector.extract_strided_slice %77 {offsets = [0, 32], sizes = [2, 32], strides = [1, 1]} : vector<2x128xf32> to vector<2x32xf32>
    %81 = vector.extract_strided_slice %78 {offsets = [0, 64], sizes = [2, 32], strides = [1, 1]} : vector<2x128xf32> to vector<2x32xf32>
    %82 = vector.extract_strided_slice %77 {offsets = [0, 96], sizes = [2, 32], strides = [1, 1]} : vector<2x128xf32> to vector<2x32xf32>
    %83 = arith.mulf %80, %44 : vector<2x32xf32>
    %84 = arith.mulf %79, %81 : vector<2x32xf32>
    %85 = arith.addf %83, %84 : vector<2x32xf32>
    %86 = math.tanh %85 : vector<2x32xf32>
    %87 = arith.mulf %82, %86 : vector<2x32xf32>
    %88 = arith.truncf %87 : vector<2x32xf32> to vector<2x32xbf16>
    %c0_25 = arith.constant 0 : index
    %c32_26 = arith.constant 32 : index
    %89 = vector.load %arg8[%c0_25, %c32_26] : memref<2x64xbf16, #tpu.memory_space<vmem>>, vector<2x32xbf16>
    tpu.vector_store %arg8[%c0_25, %c32_26], %88 {strides = array<i32>} : memref<2x64xbf16, #tpu.memory_space<vmem>>, vector<2x32xbf16>,
    %c0_27 = arith.constant 0 : index
    %c256 = arith.constant 256 : index
    %90 = vector.load %arg2[%c0_27, %c256] : memref<2x1024xf32, #tpu.memory_space<vmem>>, vector<2x128xf32>
    %91 = arith.addf %90, %70 : vector<2x128xf32>
    %92 = arith.negf %91 : vector<2x128xf32>
    %93 = math.exp %92 : vector<2x128xf32>
    %cst_28 = arith.constant 1.000000e+00 : f32
    %94 = vector.broadcast %cst_28 : f32 to vector<2x128xf32>
    %95 = arith.addf %94, %93 : vector<2x128xf32>
    %96 = arith.divf %94, %95 : vector<2x128xf32>
    %97 = math.tanh %91 : vector<2x128xf32>
    %98 = vector.extract_strided_slice %96 {offsets = [0, 0], sizes = [2, 32], strides = [1, 1]} : vector<2x128xf32> to vector<2x32xf32>
    %99 = vector.extract_strided_slice %96 {offsets = [0, 32], sizes = [2, 32], strides = [1, 1]} : vector<2x128xf32> to vector<2x32xf32>
    %100 = vector.extract_strided_slice %97 {offsets = [0, 64], sizes = [2, 32], strides = [1, 1]} : vector<2x128xf32> to vector<2x32xf32>
    %101 = vector.extract_strided_slice %96 {offsets = [0, 96], sizes = [2, 32], strides = [1, 1]} : vector<2x128xf32> to vector<2x32xf32>
    %102 = arith.mulf %99, %63 : vector<2x32xf32>
    %103 = arith.mulf %98, %100 : vector<2x32xf32>
    %104 = arith.addf %102, %103 : vector<2x32xf32>
    %105 = math.tanh %104 : vector<2x32xf32>
    %106 = arith.mulf %101, %105 : vector<2x32xf32>
    %107 = arith.truncf %106 : vector<2x32xf32> to vector<2x32xbf16>
    %c0_29 = arith.constant 0 : index
    %c0_30 = arith.constant 0 : index
    %108 = vector.load %arg8[%c0_29, %c0_30] : memref<2x64xbf16, #tpu.memory_space<vmem>>, vector<2x32xbf16>
    tpu.vector_store %arg8[%c0_29, %c0_30], %107 {strides = array<i32>} : memref<2x64xbf16, #tpu.memory_space<vmem>>, vector<2x32xbf16>,
    %c0_31 = arith.constant 0 : index
    %c0_32 = arith.constant 0 : index
    %109 = vector.load %arg8[%c0_31, %c0_32] : memref<2x64xbf16, #tpu.memory_space<vmem>>, vector<2x64xbf16>
    %cst_33 = arith.constant dense<0.000000e+00> : vector<2x256xf32>
    %110 = tpu.matmul %109, %0, %cst_33 {dimension_numbers = #tpu.dot_dimension_numbers<[1], [0], [0], [1], [0, 0, 1, 1], [], []>} : vector<2x64xbf16>, vector<64x256xbf16>, vector<2x256xf32> -> vector<2x256xf32>
    %111 = vector.extract_strided_slice %110 {offsets = [0, 0], sizes = [2, 128], strides = [1, 1]} : vector<2x256xf32> to vector<2x128xf32>
    %112 = vector.extract_strided_slice %110 {offsets = [0, 128], sizes = [2, 128], strides = [1, 1]} : vector<2x256xf32> to vector<2x128xf32>
    %113 = arith.addf %112, %3 : vector<2x128xf32>
    %114 = arith.negf %113 : vector<2x128xf32>
    %115 = math.exp %114 : vector<2x128xf32>
    %cst_34 = arith.constant 1.000000e+00 : f32
    %116 = vector.broadcast %cst_34 : f32 to vector<2x128xf32>
    %117 = arith.addf %116, %115 : vector<2x128xf32>
    %118 = arith.divf %116, %117 : vector<2x128xf32>
    %119 = math.tanh %113 : vector<2x128xf32>
    %120 = vector.extract_strided_slice %118 {offsets = [0, 0], sizes = [2, 32], strides = [1, 1]} : vector<2x128xf32> to vector<2x32xf32>
    %121 = vector.extract_strided_slice %118 {offsets = [0, 32], sizes = [2, 32], strides = [1, 1]} : vector<2x128xf32> to vector<2x32xf32>
    %122 = vector.extract_strided_slice %119 {offsets = [0, 64], sizes = [2, 32], strides = [1, 1]} : vector<2x128xf32> to vector<2x32xf32>
    %123 = vector.extract_strided_slice %118 {offsets = [0, 96], sizes = [2, 32], strides = [1, 1]} : vector<2x128xf32> to vector<2x32xf32>
    %124 = arith.mulf %121, %85 : vector<2x32xf32>
    %125 = arith.mulf %120, %122 : vector<2x32xf32>
    %126 = arith.addf %124, %125 : vector<2x32xf32>
    %127 = math.tanh %126 : vector<2x32xf32>
    %128 = arith.mulf %123, %127 : vector<2x32xf32>
    %129 = arith.truncf %128 : vector<2x32xf32> to vector<2x32xbf16>
    %c0_35 = arith.constant 0 : index
    %c32_36 = arith.constant 32 : index
    %130 = vector.load %arg8[%c0_35, %c32_36] : memref<2x64xbf16, #tpu.memory_space<vmem>>, vector<2x32xbf16>
    tpu.vector_store %arg8[%c0_35, %c32_36], %129 {strides = array<i32>} : memref<2x64xbf16, #tpu.memory_space<vmem>>, vector<2x32xbf16>,
    %c0_37 = arith.constant 0 : index
    %c384 = arith.constant 384 : index
    %131 = vector.load %arg2[%c0_37, %c384] : memref<2x1024xf32, #tpu.memory_space<vmem>>, vector<2x128xf32>
    %132 = arith.addf %131, %111 : vector<2x128xf32>
    %133 = arith.negf %132 : vector<2x128xf32>
    %134 = math.exp %133 : vector<2x128xf32>
    %cst_38 = arith.constant 1.000000e+00 : f32
    %135 = vector.broadcast %cst_38 : f32 to vector<2x128xf32>
    %136 = arith.addf %135, %134 : vector<2x128xf32>
    %137 = arith.divf %135, %136 : vector<2x128xf32>
    %138 = math.tanh %132 : vector<2x128xf32>
    %139 = vector.extract_strided_slice %137 {offsets = [0, 0], sizes = [2, 32], strides = [1, 1]} : vector<2x128xf32> to vector<2x32xf32>
    %140 = vector.extract_strided_slice %137 {offsets = [0, 32], sizes = [2, 32], strides = [1, 1]} : vector<2x128xf32> to vector<2x32xf32>
    %141 = vector.extract_strided_slice %138 {offsets = [0, 64], sizes = [2, 32], strides = [1, 1]} : vector<2x128xf32> to vector<2x32xf32>
    %142 = vector.extract_strided_slice %137 {offsets = [0, 96], sizes = [2, 32], strides = [1, 1]} : vector<2x128xf32> to vector<2x32xf32>
    %143 = arith.mulf %140, %104 : vector<2x32xf32>
    %144 = arith.mulf %139, %141 : vector<2x32xf32>
    %145 = arith.addf %143, %144 : vector<2x32xf32>
    %146 = math.tanh %145 : vector<2x32xf32>
    %147 = arith.mulf %142, %146 : vector<2x32xf32>
    %148 = arith.truncf %147 : vector<2x32xf32> to vector<2x32xbf16>
    %c0_39 = arith.constant 0 : index
    %c0_40 = arith.constant 0 : index
    %149 = vector.load %arg8[%c0_39, %c0_40] : memref<2x64xbf16, #tpu.memory_space<vmem>>, vector<2x32xbf16>
    tpu.vector_store %arg8[%c0_39, %c0_40], %148 {strides = array<i32>} : memref<2x64xbf16, #tpu.memory_space<vmem>>, vector<2x32xbf16>,
    %c0_41 = arith.constant 0 : index
    %c0_42 = arith.constant 0 : index
    %150 = vector.load %arg8[%c0_41, %c0_42] : memref<2x64xbf16, #tpu.memory_space<vmem>>, vector<2x64xbf16>
    %cst_43 = arith.constant dense<0.000000e+00> : vector<2x256xf32>
    %151 = tpu.matmul %150, %0, %cst_43 {dimension_numbers = #tpu.dot_dimension_numbers<[1], [0], [0], [1], [0, 0, 1, 1], [], []>} : vector<2x64xbf16>, vector<64x256xbf16>, vector<2x256xf32> -> vector<2x256xf32>
    %152 = vector.extract_strided_slice %151 {offsets = [0, 0], sizes = [2, 128], strides = [1, 1]} : vector<2x256xf32> to vector<2x128xf32>
    %153 = vector.extract_strided_slice %151 {offsets = [0, 128], sizes = [2, 128], strides = [1, 1]} : vector<2x256xf32> to vector<2x128xf32>
    %154 = arith.addf %153, %3 : vector<2x128xf32>
    %155 = arith.negf %154 : vector<2x128xf32>
    %156 = math.exp %155 : vector<2x128xf32>
    %cst_44 = arith.constant 1.000000e+00 : f32
    %157 = vector.broadcast %cst_44 : f32 to vector<2x128xf32>
    %158 = arith.addf %157, %156 : vector<2x128xf32>
    %159 = arith.divf %157, %158 : vector<2x128xf32>
    %160 = math.tanh %154 : vector<2x128xf32>
    %161 = vector.extract_strided_slice %159 {offsets = [0, 0], sizes = [2, 32], strides = [1, 1]} : vector<2x128xf32> to vector<2x32xf32>
    %162 = vector.extract_strided_slice %159 {offsets = [0, 32], sizes = [2, 32], strides = [1, 1]} : vector<2x128xf32> to vector<2x32xf32>
    %163 = vector.extract_strided_slice %160 {offsets = [0, 64], sizes = [2, 32], strides = [1, 1]} : vector<2x128xf32> to vector<2x32xf32>
    %164 = vector.extract_strided_slice %159 {offsets = [0, 96], sizes = [2, 32], strides = [1, 1]} : vector<2x128xf32> to vector<2x32xf32>
    %165 = arith.mulf %162, %126 : vector<2x32xf32>
    %166 = arith.mulf %161, %163 : vector<2x32xf32>
    %167 = arith.addf %165, %166 : vector<2x32xf32>
    %168 = math.tanh %167 : vector<2x32xf32>
    %169 = arith.mulf %164, %168 : vector<2x32xf32>
    %170 = arith.truncf %169 : vector<2x32xf32> to vector<2x32xbf16>
    %c0_45 = arith.constant 0 : index
    %c32_46 = arith.constant 32 : index
    %171 = vector.load %arg8[%c0_45, %c32_46] : memref<2x64xbf16, #tpu.memory_space<vmem>>, vector<2x32xbf16>
    tpu.vector_store %arg8[%c0_45, %c32_46], %170 {strides = array<i32>} : memref<2x64xbf16, #tpu.memory_space<vmem>>, vector<2x32xbf16>,
    %c0_47 = arith.constant 0 : index
    %c512 = arith.constant 512 : index
    %172 = vector.load %arg2[%c0_47, %c512] : memref<2x1024xf32, #tpu.memory_space<vmem>>, vector<2x128xf32>
    %173 = arith.addf %172, %152 : vector<2x128xf32>
    %174 = arith.negf %173 : vector<2x128xf32>
    %175 = math.exp %174 : vector<2x128xf32>
    %cst_48 = arith.constant 1.000000e+00 : f32
    %176 = vector.broadcast %cst_48 : f32 to vector<2x128xf32>
    %177 = arith.addf %176, %175 : vector<2x128xf32>
    %178 = arith.divf %176, %177 : vector<2x128xf32>
    %179 = math.tanh %173 : vector<2x128xf32>
    %180 = vector.extract_strided_slice %178 {offsets = [0, 0], sizes = [2, 32], strides = [1, 1]} : vector<2x128xf32> to vector<2x32xf32>
    %181 = vector.extract_strided_slice %178 {offsets = [0, 32], sizes = [2, 32], strides = [1, 1]} : vector<2x128xf32> to vector<2x32xf32>
    %182 = vector.extract_strided_slice %179 {offsets = [0, 64], sizes = [2, 32], strides = [1, 1]} : vector<2x128xf32> to vector<2x32xf32>
    %183 = vector.extract_strided_slice %178 {offsets = [0, 96], sizes = [2, 32], strides = [1, 1]} : vector<2x128xf32> to vector<2x32xf32>
    %184 = arith.mulf %181, %145 : vector<2x32xf32>
    %185 = arith.mulf %180, %182 : vector<2x32xf32>
    %186 = arith.addf %184, %185 : vector<2x32xf32>
    %187 = math.tanh %186 : vector<2x32xf32>
    %188 = arith.mulf %183, %187 : vector<2x32xf32>
    %189 = arith.truncf %188 : vector<2x32xf32> to vector<2x32xbf16>
    %c0_49 = arith.constant 0 : index
    %c0_50 = arith.constant 0 : index
    %190 = vector.load %arg8[%c0_49, %c0_50] : memref<2x64xbf16, #tpu.memory_space<vmem>>, vector<2x32xbf16>
    tpu.vector_store %arg8[%c0_49, %c0_50], %189 {strides = array<i32>} : memref<2x64xbf16, #tpu.memory_space<vmem>>, vector<2x32xbf16>,
    %c0_51 = arith.constant 0 : index
    %c0_52 = arith.constant 0 : index
    %191 = vector.load %arg8[%c0_51, %c0_52] : memref<2x64xbf16, #tpu.memory_space<vmem>>, vector<2x64xbf16>
    %cst_53 = arith.constant dense<0.000000e+00> : vector<2x256xf32>
    %192 = tpu.matmul %191, %0, %cst_53 {dimension_numbers = #tpu.dot_dimension_numbers<[1], [0], [0], [1], [0, 0, 1, 1], [], []>} : vector<2x64xbf16>, vector<64x256xbf16>, vector<2x256xf32> -> vector<2x256xf32>
    %193 = vector.extract_strided_slice %192 {offsets = [0, 0], sizes = [2, 128], strides = [1, 1]} : vector<2x256xf32> to vector<2x128xf32>
    %194 = vector.extract_strided_slice %192 {offsets = [0, 128], sizes = [2, 128], strides = [1, 1]} : vector<2x256xf32> to vector<2x128xf32>
    %195 = arith.addf %194, %3 : vector<2x128xf32>
    %196 = arith.negf %195 : vector<2x128xf32>
    %197 = math.exp %196 : vector<2x128xf32>
    %cst_54 = arith.constant 1.000000e+00 : f32
    %198 = vector.broadcast %cst_54 : f32 to vector<2x128xf32>
    %199 = arith.addf %198, %197 : vector<2x128xf32>
    %200 = arith.divf %198, %199 : vector<2x128xf32>
    %201 = math.tanh %195 : vector<2x128xf32>
    %202 = vector.extract_strided_slice %200 {offsets = [0, 0], sizes = [2, 32], strides = [1, 1]} : vector<2x128xf32> to vector<2x32xf32>
    %203 = vector.extract_strided_slice %200 {offsets = [0, 32], sizes = [2, 32], strides = [1, 1]} : vector<2x128xf32> to vector<2x32xf32>
    %204 = vector.extract_strided_slice %201 {offsets = [0, 64], sizes = [2, 32], strides = [1, 1]} : vector<2x128xf32> to vector<2x32xf32>
    %205 = vector.extract_strided_slice %200 {offsets = [0, 96], sizes = [2, 32], strides = [1, 1]} : vector<2x128xf32> to vector<2x32xf32>
    %206 = arith.mulf %203, %167 : vector<2x32xf32>
    %207 = arith.mulf %202, %204 : vector<2x32xf32>
    %208 = arith.addf %206, %207 : vector<2x32xf32>
    %209 = math.tanh %208 : vector<2x32xf32>
    %210 = arith.mulf %205, %209 : vector<2x32xf32>
    %211 = arith.truncf %210 : vector<2x32xf32> to vector<2x32xbf16>
    %c0_55 = arith.constant 0 : index
    %c32_56 = arith.constant 32 : index
    %212 = vector.load %arg8[%c0_55, %c32_56] : memref<2x64xbf16, #tpu.memory_space<vmem>>, vector<2x32xbf16>
    tpu.vector_store %arg8[%c0_55, %c32_56], %211 {strides = array<i32>} : memref<2x64xbf16, #tpu.memory_space<vmem>>, vector<2x32xbf16>,
    %c0_57 = arith.constant 0 : index
    %c640 = arith.constant 640 : index
    %213 = vector.load %arg2[%c0_57, %c640] : memref<2x1024xf32, #tpu.memory_space<vmem>>, vector<2x128xf32>
    %214 = arith.addf %213, %193 : vector<2x128xf32>
    %215 = arith.negf %214 : vector<2x128xf32>
    %216 = math.exp %215 : vector<2x128xf32>
    %cst_58 = arith.constant 1.000000e+00 : f32
    %217 = vector.broadcast %cst_58 : f32 to vector<2x128xf32>
    %218 = arith.addf %217, %216 : vector<2x128xf32>
    %219 = arith.divf %217, %218 : vector<2x128xf32>
    %220 = math.tanh %214 : vector<2x128xf32>
    %221 = vector.extract_strided_slice %219 {offsets = [0, 0], sizes = [2, 32], strides = [1, 1]} : vector<2x128xf32> to vector<2x32xf32>
    %222 = vector.extract_strided_slice %219 {offsets = [0, 32], sizes = [2, 32], strides = [1, 1]} : vector<2x128xf32> to vector<2x32xf32>
    %223 = vector.extract_strided_slice %220 {offsets = [0, 64], sizes = [2, 32], strides = [1, 1]} : vector<2x128xf32> to vector<2x32xf32>
    %224 = vector.extract_strided_slice %219 {offsets = [0, 96], sizes = [2, 32], strides = [1, 1]} : vector<2x128xf32> to vector<2x32xf32>
    %225 = arith.mulf %222, %186 : vector<2x32xf32>
    %226 = arith.mulf %221, %223 : vector<2x32xf32>
    %227 = arith.addf %225, %226 : vector<2x32xf32>
    %228 = math.tanh %227 : vector<2x32xf32>
    %229 = arith.mulf %224, %228 : vector<2x32xf32>
    %230 = arith.truncf %229 : vector<2x32xf32> to vector<2x32xbf16>
    %c0_59 = arith.constant 0 : index
    %c0_60 = arith.constant 0 : index
    %231 = vector.load %arg8[%c0_59, %c0_60] : memref<2x64xbf16, #tpu.memory_space<vmem>>, vector<2x32xbf16>
    tpu.vector_store %arg8[%c0_59, %c0_60], %230 {strides = array<i32>} : memref<2x64xbf16, #tpu.memory_space<vmem>>, vector<2x32xbf16>,
    %c0_61 = arith.constant 0 : index
    %c0_62 = arith.constant 0 : index
    %232 = vector.load %arg8[%c0_61, %c0_62] : memref<2x64xbf16, #tpu.memory_space<vmem>>, vector<2x64xbf16>
    %cst_63 = arith.constant dense<0.000000e+00> : vector<2x256xf32>
    %233 = tpu.matmul %232, %0, %cst_63 {dimension_numbers = #tpu.dot_dimension_numbers<[1], [0], [0], [1], [0, 0, 1, 1], [], []>} : vector<2x64xbf16>, vector<64x256xbf16>, vector<2x256xf32> -> vector<2x256xf32>
    %234 = vector.extract_strided_slice %233 {offsets = [0, 0], sizes = [2, 128], strides = [1, 1]} : vector<2x256xf32> to vector<2x128xf32>
    %235 = vector.extract_strided_slice %233 {offsets = [0, 128], sizes = [2, 128], strides = [1, 1]} : vector<2x256xf32> to vector<2x128xf32>
    %236 = arith.addf %235, %3 : vector<2x128xf32>
    %237 = arith.negf %236 : vector<2x128xf32>
    %238 = math.exp %237 : vector<2x128xf32>
    %cst_64 = arith.constant 1.000000e+00 : f32
    %239 = vector.broadcast %cst_64 : f32 to vector<2x128xf32>
    %240 = arith.addf %239, %238 : vector<2x128xf32>
    %241 = arith.divf %239, %240 : vector<2x128xf32>
    %242 = math.tanh %236 : vector<2x128xf32>
    %243 = vector.extract_strided_slice %241 {offsets = [0, 0], sizes = [2, 32], strides = [1, 1]} : vector<2x128xf32> to vector<2x32xf32>
    %244 = vector.extract_strided_slice %241 {offsets = [0, 32], sizes = [2, 32], strides = [1, 1]} : vector<2x128xf32> to vector<2x32xf32>
    %245 = vector.extract_strided_slice %242 {offsets = [0, 64], sizes = [2, 32], strides = [1, 1]} : vector<2x128xf32> to vector<2x32xf32>
    %246 = vector.extract_strided_slice %241 {offsets = [0, 96], sizes = [2, 32], strides = [1, 1]} : vector<2x128xf32> to vector<2x32xf32>
    %247 = arith.mulf %244, %208 : vector<2x32xf32>
    %248 = arith.mulf %243, %245 : vector<2x32xf32>
    %249 = arith.addf %247, %248 : vector<2x32xf32>
    %250 = math.tanh %249 : vector<2x32xf32>
    %251 = arith.mulf %246, %250 : vector<2x32xf32>
    %252 = arith.truncf %251 : vector<2x32xf32> to vector<2x32xbf16>
    %c0_65 = arith.constant 0 : index
    %c32_66 = arith.constant 32 : index
    %253 = vector.load %arg8[%c0_65, %c32_66] : memref<2x64xbf16, #tpu.memory_space<vmem>>, vector<2x32xbf16>
    tpu.vector_store %arg8[%c0_65, %c32_66], %252 {strides = array<i32>} : memref<2x64xbf16, #tpu.memory_space<vmem>>, vector<2x32xbf16>,
    %c0_67 = arith.constant 0 : index
    %c768 = arith.constant 768 : index
    %254 = vector.load %arg2[%c0_67, %c768] : memref<2x1024xf32, #tpu.memory_space<vmem>>, vector<2x128xf32>
    %255 = arith.addf %254, %234 : vector<2x128xf32>
    %256 = arith.negf %255 : vector<2x128xf32>
    %257 = math.exp %256 : vector<2x128xf32>
    %cst_68 = arith.constant 1.000000e+00 : f32
    %258 = vector.broadcast %cst_68 : f32 to vector<2x128xf32>
    %259 = arith.addf %258, %257 : vector<2x128xf32>
    %260 = arith.divf %258, %259 : vector<2x128xf32>
    %261 = math.tanh %255 : vector<2x128xf32>
    %262 = vector.extract_strided_slice %260 {offsets = [0, 0], sizes = [2, 32], strides = [1, 1]} : vector<2x128xf32> to vector<2x32xf32>
    %263 = vector.extract_strided_slice %260 {offsets = [0, 32], sizes = [2, 32], strides = [1, 1]} : vector<2x128xf32> to vector<2x32xf32>
    %264 = vector.extract_strided_slice %261 {offsets = [0, 64], sizes = [2, 32], strides = [1, 1]} : vector<2x128xf32> to vector<2x32xf32>
    %265 = vector.extract_strided_slice %260 {offsets = [0, 96], sizes = [2, 32], strides = [1, 1]} : vector<2x128xf32> to vector<2x32xf32>
    %266 = arith.mulf %263, %227 : vector<2x32xf32>
    %267 = arith.mulf %262, %264 : vector<2x32xf32>
    %268 = arith.addf %266, %267 : vector<2x32xf32>
    %269 = math.tanh %268 : vector<2x32xf32>
    %270 = arith.mulf %265, %269 : vector<2x32xf32>
    %271 = arith.truncf %270 : vector<2x32xf32> to vector<2x32xbf16>
    %c0_69 = arith.constant 0 : index
    %c0_70 = arith.constant 0 : index
    %272 = vector.load %arg8[%c0_69, %c0_70] : memref<2x64xbf16, #tpu.memory_space<vmem>>, vector<2x32xbf16>
    tpu.vector_store %arg8[%c0_69, %c0_70], %271 {strides = array<i32>} : memref<2x64xbf16, #tpu.memory_space<vmem>>, vector<2x32xbf16>,
    %c0_71 = arith.constant 0 : index
    %c0_72 = arith.constant 0 : index
    %273 = vector.load %arg8[%c0_71, %c0_72] : memref<2x64xbf16, #tpu.memory_space<vmem>>, vector<2x64xbf16>
    %cst_73 = arith.constant dense<0.000000e+00> : vector<2x256xf32>
    %274 = tpu.matmul %273, %0, %cst_73 {dimension_numbers = #tpu.dot_dimension_numbers<[1], [0], [0], [1], [0, 0, 1, 1], [], []>} : vector<2x64xbf16>, vector<64x256xbf16>, vector<2x256xf32> -> vector<2x256xf32>
    %275 = vector.extract_strided_slice %274 {offsets = [0, 0], sizes = [2, 128], strides = [1, 1]} : vector<2x256xf32> to vector<2x128xf32>
    %276 = vector.extract_strided_slice %274 {offsets = [0, 128], sizes = [2, 128], strides = [1, 1]} : vector<2x256xf32> to vector<2x128xf32>
    %277 = arith.addf %276, %3 : vector<2x128xf32>
    %278 = arith.negf %277 : vector<2x128xf32>
    %279 = math.exp %278 : vector<2x128xf32>
    %cst_74 = arith.constant 1.000000e+00 : f32
    %280 = vector.broadcast %cst_74 : f32 to vector<2x128xf32>
    %281 = arith.addf %280, %279 : vector<2x128xf32>
    %282 = arith.divf %280, %281 : vector<2x128xf32>
    %283 = math.tanh %277 : vector<2x128xf32>
    %284 = vector.extract_strided_slice %282 {offsets = [0, 0], sizes = [2, 32], strides = [1, 1]} : vector<2x128xf32> to vector<2x32xf32>
    %285 = vector.extract_strided_slice %282 {offsets = [0, 32], sizes = [2, 32], strides = [1, 1]} : vector<2x128xf32> to vector<2x32xf32>
    %286 = vector.extract_strided_slice %283 {offsets = [0, 64], sizes = [2, 32], strides = [1, 1]} : vector<2x128xf32> to vector<2x32xf32>
    %287 = vector.extract_strided_slice %282 {offsets = [0, 96], sizes = [2, 32], strides = [1, 1]} : vector<2x128xf32> to vector<2x32xf32>
    %288 = arith.mulf %285, %249 : vector<2x32xf32>
    %289 = arith.mulf %284, %286 : vector<2x32xf32>
    %290 = arith.addf %288, %289 : vector<2x32xf32>
    %291 = math.tanh %290 : vector<2x32xf32>
    %292 = arith.mulf %287, %291 : vector<2x32xf32>
    %293 = arith.truncf %292 : vector<2x32xf32> to vector<2x32xbf16>
    %c0_75 = arith.constant 0 : index
    %c32_76 = arith.constant 32 : index
    %294 = vector.load %arg8[%c0_75, %c32_76] : memref<2x64xbf16, #tpu.memory_space<vmem>>, vector<2x32xbf16>
    tpu.vector_store %arg8[%c0_75, %c32_76], %293 {strides = array<i32>} : memref<2x64xbf16, #tpu.memory_space<vmem>>, vector<2x32xbf16>,
    %c0_77 = arith.constant 0 : index
    %c896 = arith.constant 896 : index
    %295 = vector.load %arg2[%c0_77, %c896] : memref<2x1024xf32, #tpu.memory_space<vmem>>, vector<2x128xf32>
    %296 = arith.addf %295, %275 : vector<2x128xf32>
    %297 = arith.negf %296 : vector<2x128xf32>
    %298 = math.exp %297 : vector<2x128xf32>
    %cst_78 = arith.constant 1.000000e+00 : f32
    %299 = vector.broadcast %cst_78 : f32 to vector<2x128xf32>
    %300 = arith.addf %299, %298 : vector<2x128xf32>
    %301 = arith.divf %299, %300 : vector<2x128xf32>
    %302 = math.tanh %296 : vector<2x128xf32>
    %303 = vector.extract_strided_slice %301 {offsets = [0, 0], sizes = [2, 32], strides = [1, 1]} : vector<2x128xf32> to vector<2x32xf32>
    %304 = vector.extract_strided_slice %301 {offsets = [0, 32], sizes = [2, 32], strides = [1, 1]} : vector<2x128xf32> to vector<2x32xf32>
    %305 = vector.extract_strided_slice %302 {offsets = [0, 64], sizes = [2, 32], strides = [1, 1]} : vector<2x128xf32> to vector<2x32xf32>
    %306 = vector.extract_strided_slice %301 {offsets = [0, 96], sizes = [2, 32], strides = [1, 1]} : vector<2x128xf32> to vector<2x32xf32>
    %307 = arith.mulf %304, %268 : vector<2x32xf32>
    %308 = arith.mulf %303, %305 : vector<2x32xf32>
    %309 = arith.addf %307, %308 : vector<2x32xf32>
    %310 = math.tanh %309 : vector<2x32xf32>
    %311 = arith.mulf %306, %310 : vector<2x32xf32>
    %312 = arith.truncf %311 : vector<2x32xf32> to vector<2x32xbf16>
    %c0_79 = arith.constant 0 : index
    %c0_80 = arith.constant 0 : index
    %313 = vector.load %arg8[%c0_79, %c0_80] : memref<2x64xbf16, #tpu.memory_space<vmem>>, vector<2x32xbf16>
    tpu.vector_store %arg8[%c0_79, %c0_80], %312 {strides = array<i32>} : memref<2x64xbf16, #tpu.memory_space<vmem>>, vector<2x32xbf16>,
    %c0_81 = arith.constant 0 : index
    %c0_82 = arith.constant 0 : index
    %314 = vector.load %arg8[%c0_81, %c0_82] : memref<2x64xbf16, #tpu.memory_space<vmem>>, vector<2x64xbf16>
    %cst_83 = arith.constant dense<0.000000e+00> : vector<2x256xf32>
    %315 = tpu.matmul %314, %0, %cst_83 {dimension_numbers = #tpu.dot_dimension_numbers<[1], [0], [0], [1], [0, 0, 1, 1], [], []>} : vector<2x64xbf16>, vector<64x256xbf16>, vector<2x256xf32> -> vector<2x256xf32>
    %316 = vector.extract_strided_slice %315 {offsets = [0, 128], sizes = [2, 128], strides = [1, 1]} : vector<2x256xf32> to vector<2x128xf32>
    %317 = arith.addf %316, %3 : vector<2x128xf32>
    %318 = arith.negf %317 : vector<2x128xf32>
    %319 = math.exp %318 : vector<2x128xf32>
    %cst_84 = arith.constant 1.000000e+00 : f32
    %320 = vector.broadcast %cst_84 : f32 to vector<2x128xf32>
    %321 = arith.addf %320, %319 : vector<2x128xf32>
    %322 = arith.divf %320, %321 : vector<2x128xf32>
    %323 = math.tanh %317 : vector<2x128xf32>
    %324 = vector.extract_strided_slice %322 {offsets = [0, 0], sizes = [2, 32], strides = [1, 1]} : vector<2x128xf32> to vector<2x32xf32>
    %325 = vector.extract_strided_slice %322 {offsets = [0, 32], sizes = [2, 32], strides = [1, 1]} : vector<2x128xf32> to vector<2x32xf32>
    %326 = vector.extract_strided_slice %323 {offsets = [0, 64], sizes = [2, 32], strides = [1, 1]} : vector<2x128xf32> to vector<2x32xf32>
    %327 = vector.extract_strided_slice %322 {offsets = [0, 96], sizes = [2, 32], strides = [1, 1]} : vector<2x128xf32> to vector<2x32xf32>
    %328 = arith.mulf %325, %290 : vector<2x32xf32>
    %329 = arith.mulf %324, %326 : vector<2x32xf32>
    %330 = arith.addf %328, %329 : vector<2x32xf32>
    %331 = math.tanh %330 : vector<2x32xf32>
    %332 = arith.mulf %327, %331 : vector<2x32xf32>
    %333 = arith.truncf %332 : vector<2x32xf32> to vector<2x32xbf16>
    %c0_85 = arith.constant 0 : index
    %c32_86 = arith.constant 32 : index
    %334 = vector.load %arg8[%c0_85, %c32_86] : memref<2x64xbf16, #tpu.memory_space<vmem>>, vector<2x32xbf16>
    tpu.vector_store %arg8[%c0_85, %c32_86], %333 {strides = array<i32>} : memref<2x64xbf16, #tpu.memory_space<vmem>>, vector<2x32xbf16>,
    %c0_87 = arith.constant 0 : index
    %c0_88 = arith.constant 0 : index
    %335 = vector.load %arg5[%c0_87, %c0_88] : memref<32x128xf32, #tpu.memory_space<vmem>>, vector<32x128xf32>
    %cst_89 = arith.constant dense<0.000000e+00> : vector<2x128xf32>
    %336 = tpu.matmul %332, %335, %cst_89 {dimension_numbers = #tpu.dot_dimension_numbers<[1], [0], [0], [1], [0, 0, 1, 1], [], []>} : vector<2x32xf32>, vector<32x128xf32>, vector<2x128xf32> -> vector<2x128xf32>
    %c0_90 = arith.constant 0 : index
    %c0_91 = arith.constant 0 : index
    %337 = vector.load %arg6[%c0_90, %c0_91] : memref<1x128xf32, #tpu.memory_space<vmem>>, vector<1x128xf32>
    %338 = vector.broadcast %337 : vector<1x128xf32> to vector<2x128xf32>
    %339 = arith.addf %336, %338 : vector<2x128xf32>
    %340 = vector.extract_strided_slice %339 {offsets = [0, 0], sizes = [2, 1], strides = [1, 1]} : vector<2x128xf32> to vector<2x1xf32>
    %341 = arith.negf %340 : vector<2x1xf32>
    %342 = math.exp %341 : vector<2x1xf32>
    %cst_92 = arith.constant 1.000000e+00 : f32
    %343 = vector.broadcast %cst_92 : f32 to vector<2x1xf32>
    %344 = arith.addf %343, %342 : vector<2x1xf32>
    %345 = arith.divf %343, %344 : vector<2x1xf32>
    %346 = vector.extract_strided_slice %339 {offsets = [0, 1], sizes = [2, 64], strides = [1, 1]} : vector<2x128xf32> to vector<2x64xf32>
    %cst_93 = arith.constant 5.000000e-01 : f32
    %347 = vector.broadcast %cst_93 : f32 to vector<2x1xf32>
    %348 = arith.addf %345, %347 : vector<2x1xf32>
    %cst_94 = arith.constant 0.000000e+00 : f32
    %349 = vector.broadcast %cst_94 : f32 to vector<2x1xf32>
    %350 = arith.subf %349, %348 : vector<2x1xf32>
    %351 = math.exp %350 : vector<2x1xf32>
    %352 = vector.broadcast %351 : vector<2x1xf32> to vector<2x64xf32>
    %353 = arith.mulf %352, %346 : vector<2x64xf32>
    %354 = tpu.concatenate %353, %353, %353, %353, %353, %353, %353, %353 in 1 : vector<2x64xf32>, vector<2x64xf32>, vector<2x64xf32>, vector<2x64xf32>, vector<2x64xf32>, vector<2x64xf32>, vector<2x64xf32>, vector<2x64xf32> -> vector<2x512xf32>
    %c0_95 = arith.constant 0 : index
    %c0_96 = arith.constant 0 : index
    %355 = vector.load %arg1[%c0_95, %c0_96] : memref<2x512xf32, #tpu.memory_space<vmem>>, vector<2x512xf32>
    %356 = math.absf %355 : vector<2x512xf32>
    %357 = arith.mulf %356, %354 : vector<2x512xf32>
    %c0_97 = arith.constant 0 : index
    %c0_98 = arith.constant 0 : index
    %358 = vector.load %arg7[%c0_97, %c0_98] : memref<2x512xf32, #tpu.memory_space<vmem>>, vector<2x512xf32>
    tpu.vector_store %arg7[%c0_97, %c0_98], %357 {strides = array<i32>} : memref<2x512xf32, #tpu.memory_space<vmem>>, vector<2x512xf32>,
    return
  }
  func.func @transform_0(%arg0: i32) -> (i32, i32) {
    %c0_i32 = arith.constant 0 : i32
    %c0_i32_0 = arith.constant 0 : i32
    %c0_i32_1 = arith.constant 0 : i32
    return %c0_i32, %c0_i32_0 : i32, i32
  }
  func.func @transform_1(%arg0: i32) -> (i32, i32) {
    %c0_i32 = arith.constant 0 : i32
    %c0_i32_0 = arith.constant 0 : i32
    %c0_i32_1 = arith.constant 0 : i32
    return %c0_i32, %c0_i32_0 : i32, i32
  }
  func.func @transform_2(%arg0: i32) -> (i32, i32) {
    %c0_i32 = arith.constant 0 : i32
    %c0_i32_0 = arith.constant 0 : i32
    %c0_i32_1 = arith.constant 0 : i32
    return %c0_i32, %c0_i32_0 : i32, i32
  }
  func.func @transform_3(%arg0: i32) -> (i32, i32) {
    %c0_i32 = arith.constant 0 : i32
    %c0_i32_0 = arith.constant 0 : i32
    %c0_i32_1 = arith.constant 0 : i32
    return %c0_i32, %c0_i32_0 : i32, i32
  }
  func.func @transform_4(%arg0: i32) -> (i32, i32) {
    %c0_i32 = arith.constant 0 : i32
    %c0_i32_0 = arith.constant 0 : i32
    %c0_i32_1 = arith.constant 0 : i32
    return %c0_i32, %c0_i32_0 : i32, i32
  }
  func.func @transform_5(%arg0: i32) -> (i32, i32) {
    %c0_i32 = arith.constant 0 : i32
    %c0_i32_0 = arith.constant 0 : i32
    %c0_i32_1 = arith.constant 0 : i32
    return %c0_i32, %c0_i32_0 : i32, i32
  }
  func.func @transform_6(%arg0: i32) -> (i32, i32) {
    %c0_i32 = arith.constant 0 : i32
    %c0_i32_0 = arith.constant 0 : i32
    %c0_i32_1 = arith.constant 0 : i32
    return %c0_i32, %c0_i32_0 : i32, i32
  }
}

</mosaic_0001>

<llo_original>
// kernel: tpu_custom_call.1
$region0: #{tpu_custom_call.1}
  #allocation0 [shape = 'u32[]', space=smem, size = 0x4, offset = 0x4, fixed_abs, tag = 'smem constant byte address 0x4 - core index']
  #allocation1 [shape = 'u32[144,128]{1,0:T(1,128)}', space=vmem, size = 0x12000, scoped, tag = 'internal scratch']
  #allocation2 [shape = 'bf16[2,64]{1,0:T(2,128)(2,1)}', space=vmem, size = 0x200, scoped, tag = 'scratch operand']
  %s0 = inlined_call_operand.hbm [shape: f32[2,512], index: 0, kind: input, shape index: {}]
  %s1 = inlined_call_operand.hbm [shape: f32[2,1024], index: 1, kind: input, shape index: {}]
  %s2 = inlined_call_operand.hbm [shape: bf16[64,256], index: 2, kind: input, shape index: {}]
  %s3 = inlined_call_operand.vmem [shape: f32[1,128], index: 3, kind: input, shape index: {}]
  %s4 = inlined_call_operand.hbm [shape: f32[32,128], index: 4, kind: input, shape index: {}]
  %s5 = inlined_call_operand.vmem [shape: f32[1,128], index: 5, kind: input, shape index: {}]
  %s6 = inlined_call_operand.hbm [shape: f32[2,512], index: 6, kind: output, shape index: {}]
  %s7 = sld [smem:[#allocation0]]
  $region50: #{tpu_custom_call.1} parent=0
    _
  %s9 = ssub.s32 1, %s7
  %s10 = scalar_select 0, %s9, %s7
  $region1: #{tpu_custom_call.1} parent=0
    #allocation3 [shape = 'u8[4096]{0}', space=vmem, size = 0x1000, scoped, tag = 'input window, operand 0, single buffered']
    #allocation4 [shape = 's32[1]{0}', space=sflag, size = 0x4, scoped, tag = 'scoped memory for tpu_custom_call.1']
    #allocation5 [shape = 's32[1]{0}', space=sflag, size = 0x4, scoped, tag = 'scoped memory for tpu_custom_call.1']
    #allocation6 [shape = 'u8[8192]{0}', space=vmem, size = 0x2000, scoped, tag = 'input window, operand 1, single buffered']
    #allocation7 [shape = 's32[1]{0}', space=sflag, size = 0x4, scoped, tag = 'scoped memory for tpu_custom_call.1']
    #allocation8 [shape = 'u8[32768]{0}', space=vmem, size = 0x8000, scoped, tag = 'input window, operand 2, single buffered']
    #allocation9 [shape = 'u8[16384]{0}', space=vmem, size = 0x4000, scoped, tag = 'input window, operand 4, single buffered']
    #allocation10 [shape = 's32[1]{0}', space=sflag, size = 0x4, scoped, tag = 'scoped memory for tpu_custom_call.1']
    #allocation11 [shape = 'u8[4096]{0}', space=vmem, size = 0x1000, scoped, tag = 'output window, operand 0, single buffered']
    %11 = vsyncpa [#allocation4], 0
    %12 = vsyncpa [#allocation7], 0
    %13 = vsyncpa [#allocation10], 0
    %14 = vsyncpa [#allocation5], 0
    // Predicated region
    $region2: #{tpu_custom_call.1} parent=1 // pred_check
      _
    $region3: #{tpu_custom_call.1} parent=1 // pred_check_branch
      %16 = sbr.rel (0) target = $region5
    $region4: #{tpu_custom_call.1} parent=1 // pred_region
      %s18 = ssub.s32 128, 128
      %19 = vsyncadd [#allocation4], %s18
      %s21 = sshll.u32 [#allocation3], 4
      %s22 = int_to_ptr.vmem [resolvable:$true] %s21
      %24 = dma.hbm_to_vmem [thread:$0]  %s0, 128, %s22, [#allocation4]
    $region5: #{tpu_custom_call.1} parent=1 // pred_fallthru
      _
    // Predicated region
    $region6: #{tpu_custom_call.1} parent=1 // pred_check
      _
    $region7: #{tpu_custom_call.1} parent=1 // pred_check_branch
      %26 = sbr.rel (0) target = $region9
    $region8: #{tpu_custom_call.1} parent=1 // pred_region
      %s28 = ssub.s32 256, 256
      %29 = vsyncadd [#allocation7], %s28
      %s31 = sshll.u32 [#allocation6], 4
      %s32 = int_to_ptr.vmem [resolvable:$true] %s31
      %34 = dma.hbm_to_vmem [thread:$0]  %s1, 256, %s32, [#allocation7]
    $region9: #{tpu_custom_call.1} parent=1 // pred_fallthru
      _
    // Predicated region
    $region10: #{tpu_custom_call.1} parent=1 // pred_check
      _
    $region11: #{tpu_custom_call.1} parent=1 // pred_check_branch
      %36 = sbr.rel (0) target = $region13
    $region12: #{tpu_custom_call.1} parent=1 // pred_region
      %s38 = ssub.s32 1024, 1024
      %39 = vsyncadd [#allocation7], %s38
      %s40 = sshll.u32 [#allocation8], 4
      %s41 = int_to_ptr.vmem [resolvable:$true] %s40
      %46 = dma.hbm_to_vmem [thread:$0]  %s2, 1024, %s41, [#allocation7], 128, 128, 8
    $region13: #{tpu_custom_call.1} parent=1 // pred_fallthru
      _
    // Predicated region
    $region14: #{tpu_custom_call.1} parent=1 // pred_check
      _
    $region15: #{tpu_custom_call.1} parent=1 // pred_check_branch
      %48 = sbr.rel (0) target = $region17
    $region16: #{tpu_custom_call.1} parent=1 // pred_region
      _
    $region17: #{tpu_custom_call.1} parent=1 // pred_fallthru
      _
    // Predicated region
    $region18: #{tpu_custom_call.1} parent=1 // pred_check
      _
    $region19: #{tpu_custom_call.1} parent=1 // pred_check_branch
      %50 = sbr.rel (0) target = $region21
    $region20: #{tpu_custom_call.1} parent=1 // pred_region
      %s52 = ssub.s32 512, 512
      %53 = vsyncadd [#allocation10], %s52
      %s54 = sshll.u32 [#allocation9], 4
      %s55 = int_to_ptr.vmem [resolvable:$true] %s54
      %60 = dma.hbm_to_vmem [thread:$0]  %s4, 512, %s55, [#allocation10], 128, 128, 8
    $region21: #{tpu_custom_call.1} parent=1 // pred_fallthru
      _
    // Predicated region
    $region22: #{tpu_custom_call.1} parent=1 // pred_check
      _
    $region23: #{tpu_custom_call.1} parent=1 // pred_check_branch
      %62 = sbr.rel (0) target = $region25
    $region24: #{tpu_custom_call.1} parent=1 // pred_region
      _
    $region25: #{tpu_custom_call.1} parent=1 // pred_fallthru
      _
    // Predicated region
    $region26: #{tpu_custom_call.1} parent=1 // pred_check
      _
    $region27: #{tpu_custom_call.1} parent=1 // pred_check_branch
      %64 = sbr.rel (0) target = $region29
    $region28: #{tpu_custom_call.1} parent=1 // pred_region
      %65 = dma.done [#allocation4], 128
    $region29: #{tpu_custom_call.1} parent=1 // pred_fallthru
      _
    // Predicated region
    $region30: #{tpu_custom_call.1} parent=1 // pred_check
      _
    $region31: #{tpu_custom_call.1} parent=1 // pred_check_branch
      %67 = sbr.rel (0) target = $region33
    $region32: #{tpu_custom_call.1} parent=1 // pred_region
      %68 = dma.done [#allocation7], 256
    $region33: #{tpu_custom_call.1} parent=1 // pred_fallthru
      _
    // Predicated region
    $region34: #{tpu_custom_call.1} parent=1 // pred_check
      _
    $region35: #{tpu_custom_call.1} parent=1 // pred_check_branch
      %70 = sbr.rel (0) target = $region37
    $region36: #{tpu_custom_call.1} parent=1 // pred_region
      %71 = dma.done [#allocation7], 1024
    $region37: #{tpu_custom_call.1} parent=1 // pred_fallthru
      _
    // Predicated region
    $region38: #{tpu_custom_call.1} parent=1 // pred_check
      _
    $region39: #{tpu_custom_call.1} parent=1 // pred_check_branch
      %73 = sbr.rel (0) target = $region41
    $region40: #{tpu_custom_call.1} parent=1 // pred_region
      %74 = dma.done [#allocation10], 512
    $region41: #{tpu_custom_call.1} parent=1 // pred_fallthru
      _
    %v76 = vld [vmem:[#allocation8] sm:$0xff]
    %v77 = vld [vmem:[#allocation8 + $0x8] sm:$0xff]
    %v78 = vld [vmem:[#allocation8 + $0x10] sm:$0xff]
    %v79 = vld [vmem:[#allocation8 + $0x18] sm:$0xff]
    %v80 = vld [vmem:[#allocation8 + $0x20] sm:$0xff]
    %v81 = vld [vmem:[#allocation8 + $0x28] sm:$0xff]
    %v82 = vld [vmem:[#allocation8 + $0x30] sm:$0xff]
    %v83 = vld [vmem:[#allocation8 + $0x38] sm:$0xff]
    %v84 = vld [vmem:[%s3] sm:$0x1]
    %v86 = vlaneseq
    %v87 = vshrl.u32 %v86, 7
    %v88 = vsub.s32 0, %v87
    %v89 = vrot.slane %v84, %v88
    %vm91 = vcmask 516096
    %92 = vst.msk [vmem:[#allocation2] sm:$0x1] %vm91, 0
    %v93 = vld [vmem:[#allocation6] sm:$0x3]
    %v94 = vadd.f32 %v93, 0.0
    %v95 = vxor.u32 %v94, 2147483648
    %v96 = vmul.f32 %v95, 1.442695
    %v97 = vpow.pop %v96
    %v98 = vadd.f32 %v97, 1.0
    %v99 = vrcp.pop %v98
    %v100 = vmul.f32 1.0, %v99
    %v101 = vtanh.pop %v94
    %v102 = vmul.f32 %v100, 0.0
    %104 = vrot.lane.b32.xlu0 %v101, 64
    %v105 = vpop.permute.xlu0 %104
    %v107 = vmul.f32 %v100, %v105
    %109 = vrot.lane.b32.xlu0 %v107, 32
    %v110 = vpop.permute.xlu0 %109
    %v112 = vadd.f32 %v102, %v110
    %v113 = vtanh.pop %v112
    %115 = vrot.lane.b32.xlu0 %v113, 64
    %v116 = vpop.permute.xlu0 %115
    %v118 = vmul.f32 %v100, %v116
    %v119 = vpack.c.bf16 %v118, %v118
    %v122 = vunpack.c.l.s4 1966171168
    %v123 = vunpack.c.0.s8 %v122
    %v124 = vlaneseq
    %v125 = vshrl.u32 %v124, 7
    %v126 = vsub.s32 %v123, %v125
    %v127 = vrot.slane %v119, %v126
    %v129 = vunpack.c.l.s4 1966171168
    %v130 = vunpack.c.0.s8 %v129
    %v131 = vlaneseq
    %v132 = vshrl.u32 %v131, 7
    %v133 = vsub.s32 %v130, %v132
    %v134 = vrot.slane %v127, %v133
    %135 = vrot.lane.b32.xlu0 %v134, 32
    %v136 = vpop.permute.xlu0 %135
    %vm138 = vcmask 253952
    %139 = vst.msk [vmem:[#allocation2] sm:$0x1] %vm138, %v136
    %v140 = vld [vmem:[#allocation2] sm:$0x1]
    %v149 = vunpack.c.l.b16 %v76
    %v150 = vunpack.c.h.b16 %v76
    %v151 = vunpack.c.l.b16 %v77
    %v152 = vunpack.c.h.b16 %v77
    %v153 = vunpack.c.l.b16 %v78
    %v154 = vunpack.c.h.b16 %v78
    %v155 = vunpack.c.l.b16 %v79
    %v156 = vunpack.c.h.b16 %v79
    %v157 = vunpack.c.l.b16 %v80
    %v158 = vunpack.c.h.b16 %v80
    %v159 = vunpack.c.l.b16 %v81
    %v160 = vunpack.c.h.b16 %v81
    %v161 = vunpack.c.l.b16 %v82
    %v162 = vunpack.c.h.b16 %v82
    %v163 = vunpack.c.l.b16 %v83
    %v164 = vunpack.c.h.b16 %v83
    %v165 = vpack.c.b16 %v151, %v149
    %v166 = vpack.c.b16 %v152, %v150
    %v167 = vpack.c.b16 %v155, %v153
    %v168 = vpack.c.b16 %v156, %v154
    %v169 = vpack.c.b16 %v159, %v157
    %v170 = vpack.c.b16 %v160, %v158
    %v171 = vpack.c.b16 %v163, %v161
    %v172 = vpack.c.b16 %v164, %v162
    %vm181 = vcmask 523264
    %v183 = vsel %vm181, %v140, 0
    %185 = vmatprep.subr.bf16.mxu0 0
    %186 = vmatpush1.bf16.msra.mxu0 0
    %187 = vmatprep.subr.bf16.mxu0 0
    %188 = vmatpush1.bf16.msra.mxu0 0
    %189 = vmatprep.subr.bf16.mxu0 0
    %190 = vmatpush1.bf16.msra.mxu0 0
    %191 = vmatprep.subr.bf16.mxu0 0
    %192 = vmatpush1.bf16.msra.mxu0 0
    %193 = vmatprep.subr.bf16.mxu0 %v172
    %194 = vmatpush1.bf16.msra.mxu0 %v171
    %195 = vmatprep.subr.bf16.mxu0 %v170
    %196 = vmatpush1.bf16.msra.mxu0 %v169
    %197 = vmatprep.subr.bf16.mxu0 %v168
    %198 = vmatpush1.bf16.msra.mxu0 %v167
    %199 = vmatprep.subr.bf16.mxu0 %v166
    %200 = vmatpush1.bf16.msra.mxu0 %v165
    %201 = vmatprep.subr.bf16.mxu0 0
    %202 = vmatpush2.bf16.msra.mxu0 0
    %203 = vmatprep.subr.bf16.mxu0 0
    %204 = vmatpush2.bf16.msra.mxu0 0
    %205 = vmatprep.subr.bf16.mxu0 0
    %206 = vmatpush2.bf16.msra.mxu0 0
    %207 = vmatprep.subr.bf16.mxu0 0
    %208 = vmatpush2.bf16.msra.mxu0 0
    %209 = vmatprep.subr.bf16.mxu0 0
    %210 = vmatpush2.bf16.msra.mxu0 0
    %211 = vmatprep.subr.bf16.mxu0 0
    %212 = vmatpush2.bf16.msra.mxu0 0
    %213 = vmatprep.subr.bf16.mxu0 0
    %214 = vmatpush2.bf16.msra.mxu0 0
    %215 = vmatprep.subr.bf16.mxu0 0
    %216 = vmatpush2.bf16.msra.mxu0 0
    %217 = vmatprep.mubr.bf16.mxu0 0
    %218 = vmatmul.mubr.bf16.gmra.mxu0 %v183
    %v219 = vpop.f32.mrf.mxu0
    %v220 = vadd.f32 0.0, %v219
    %v221 = vpop.f32.mrf.mxu0
    %v222 = vadd.f32 0.0, %v221
    %v223 = vpop.f32.mrf.mxu0
    %v224 = vpop.f32.mrf.mxu0
    %225 = vdwg.mxu0
    %v226 = vadd.f32 %v222, %v89
    %v227 = vxor.u32 %v226, 2147483648
    %v228 = vmul.f32 %v227, 1.442695
    %v229 = vpow.pop %v228
    %v230 = vadd.f32 %v229, 1.0
    %v231 = vrcp.pop %v230
    %v232 = vmul.f32 1.0, %v231
    %v233 = vtanh.pop %v226
    %v234 = vmul.f32 %v232, 0.0
    %236 = vrot.lane.b32.xlu0 %v233, 64
    %v237 = vpop.permute.xlu0 %236
    %v239 = vmul.f32 %v232, %v237
    %241 = vrot.lane.b32.xlu0 %v239, 32
    %v242 = vpop.permute.xlu0 %241
    %v244 = vadd.f32 %v234, %v242
    %v245 = vtanh.pop %v244
    %247 = vrot.lane.b32.xlu0 %v245, 64
    %v248 = vpop.permute.xlu0 %247
    %v250 = vmul.f32 %v232, %v248
    %v251 = vpack.c.bf16 %v250, %v250
    %v254 = vunpack.c.l.s4 1966171168
    %v255 = vunpack.c.0.s8 %v254
    %v256 = vlaneseq
    %v257 = vshrl.u32 %v256, 7
    %v258 = vsub.s32 %v255, %v257
    %v259 = vrot.slane %v251, %v258
    %v261 = vunpack.c.l.s4 1966171168
    %v262 = vunpack.c.0.s8 %v261
    %v263 = vlaneseq
    %v264 = vshrl.u32 %v263, 7
    %v265 = vsub.s32 %v262, %v264
    %v266 = vrot.slane %v259, %v265
    %267 = vrot.lane.b32.xlu0 %v266, 64
    %v268 = vpop.permute.xlu0 %267
    %vm270 = vcmask 516352
    %271 = vst.msk [vmem:[#allocation2] sm:$0x1] %vm270, %v268
    %v272 = vld [vmem:[#allocation6 + $0x2] sm:$0x3]
    %v273 = vadd.f32 %v272, %v220
    %v274 = vxor.u32 %v273, 2147483648
    %v275 = vmul.f32 %v274, 1.442695
    %v276 = vpow.pop %v275
    %v277 = vadd.f32 %v276, 1.0
    %v278 = vrcp.pop %v277
    %v279 = vmul.f32 1.0, %v278
    %v280 = vtanh.pop %v273
    %v281 = vmul.f32 %v279, %v112
    %283 = vrot.lane.b32.xlu0 %v280, 64
    %v284 = vpop.permute.xlu0 %283
    %v286 = vmul.f32 %v279, %v284
    %288 = vrot.lane.b32.xlu0 %v286, 32
    %v289 = vpop.permute.xlu0 %288
    %v291 = vadd.f32 %v281, %v289
    %v292 = vtanh.pop %v291
    %294 = vrot.lane.b32.xlu0 %v292, 64
    %v295 = vpop.permute.xlu0 %294
    %v297 = vmul.f32 %v279, %v295
    %v298 = vpack.c.bf16 %v297, %v297
    %v301 = vunpack.c.l.s4 1966171168
    %v302 = vunpack.c.0.s8 %v301
    %v303 = vlaneseq
    %v304 = vshrl.u32 %v303, 7
    %v305 = vsub.s32 %v302, %v304
    %v306 = vrot.slane %v298, %v305
    %v308 = vunpack.c.l.s4 1966171168
    %v309 = vunpack.c.0.s8 %v308
    %v310 = vlaneseq
    %v311 = vshrl.u32 %v310, 7
    %v312 = vsub.s32 %v309, %v311
    %v313 = vrot.slane %v306, %v312
    %314 = vrot.lane.b32.xlu0 %v313, 32
    %v315 = vpop.permute.xlu0 %314
    %317 = vst.msk [vmem:[#allocation2] sm:$0x1] %vm138, %v315
    %v318 = vld [vmem:[#allocation2] sm:$0x1]
    %v320 = vsel %vm181, %v318, 0
    %322 = vmatprep.subr.bf16.mxu0 0
    %323 = vmatpush1.bf16.msra.mxu0 0
    %324 = vmatprep.subr.bf16.mxu0 0
    %325 = vmatpush1.bf16.msra.mxu0 0
    %326 = vmatprep.subr.bf16.mxu0 0
    %327 = vmatpush1.bf16.msra.mxu0 0
    %328 = vmatprep.subr.bf16.mxu0 0
    %329 = vmatpush1.bf16.msra.mxu0 0
    %330 = vmatprep.subr.bf16.mxu0 %v172
    %331 = vmatpush1.bf16.msra.mxu0 %v171
    %332 = vmatprep.subr.bf16.mxu0 %v170
    %333 = vmatpush1.bf16.msra.mxu0 %v169
    %334 = vmatprep.subr.bf16.mxu0 %v168
    %335 = vmatpush1.bf16.msra.mxu0 %v167
    %336 = vmatprep.subr.bf16.mxu0 %v166
    %337 = vmatpush1.bf16.msra.mxu0 %v165
    %338 = vmatprep.subr.bf16.mxu0 0
    %339 = vmatpush2.bf16.msra.mxu0 0
    %340 = vmatprep.subr.bf16.mxu0 0
    %341 = vmatpush2.bf16.msra.mxu0 0
    %342 = vmatprep.subr.bf16.mxu0 0
    %343 = vmatpush2.bf16.msra.mxu0 0
    %344 = vmatprep.subr.bf16.mxu0 0
    %345 = vmatpush2.bf16.msra.mxu0 0
    %346 = vmatprep.subr.bf16.mxu0 0
    %347 = vmatpush2.bf16.msra.mxu0 0
    %348 = vmatprep.subr.bf16.mxu0 0
    %349 = vmatpush2.bf16.msra.mxu0 0
    %350 = vmatprep.subr.bf16.mxu0 0
    %351 = vmatpush2.bf16.msra.mxu0 0
    %352 = vmatprep.subr.bf16.mxu0 0
    %353 = vmatpush2.bf16.msra.mxu0 0
    %354 = vmatprep.mubr.bf16.mxu0 0
    %355 = vmatmul.mubr.bf16.gmra.mxu0 %v320
    %v356 = vpop.f32.mrf.mxu0
    %v357 = vadd.f32 0.0, %v356
    %v358 = vpop.f32.mrf.mxu0
    %v359 = vadd.f32 0.0, %v358
    %v360 = vpop.f32.mrf.mxu0
    %v361 = vpop.f32.mrf.mxu0
    %362 = vdwg.mxu0
    %v363 = vadd.f32 %v359, %v89
    %v364 = vxor.u32 %v363, 2147483648
    %v365 = vmul.f32 %v364, 1.442695
    %v366 = vpow.pop %v365
    %v367 = vadd.f32 %v366, 1.0
    %v368 = vrcp.pop %v367
    %v369 = vmul.f32 1.0, %v368
    %v370 = vtanh.pop %v363
    %v371 = vmul.f32 %v369, %v244
    %373 = vrot.lane.b32.xlu0 %v370, 64
    %v374 = vpop.permute.xlu0 %373
    %v376 = vmul.f32 %v369, %v374
    %378 = vrot.lane.b32.xlu0 %v376, 32
    %v379 = vpop.permute.xlu0 %378
    %v381 = vadd.f32 %v371, %v379
    %v382 = vtanh.pop %v381
    %384 = vrot.lane.b32.xlu0 %v382, 64
    %v385 = vpop.permute.xlu0 %384
    %v387 = vmul.f32 %v369, %v385
    %v388 = vpack.c.bf16 %v387, %v387
    %v391 = vunpack.c.l.s4 1966171168
    %v392 = vunpack.c.0.s8 %v391
    %v393 = vlaneseq
    %v394 = vshrl.u32 %v393, 7
    %v395 = vsub.s32 %v392, %v394
    %v396 = vrot.slane %v388, %v395
    %v398 = vunpack.c.l.s4 1966171168
    %v399 = vunpack.c.0.s8 %v398
    %v400 = vlaneseq
    %v401 = vshrl.u32 %v400, 7
    %v402 = vsub.s32 %v399, %v401
    %v403 = vrot.slane %v396, %v402
    %404 = vrot.lane.b32.xlu0 %v403, 64
    %v405 = vpop.permute.xlu0 %404
    %407 = vst.msk [vmem:[#allocation2] sm:$0x1] %vm270, %v405
    %v408 = vld [vmem:[#allocation6 + $0x4] sm:$0x3]
    %v409 = vadd.f32 %v408, %v357
    %v410 = vxor.u32 %v409, 2147483648
    %v411 = vmul.f32 %v410, 1.442695
    %v412 = vpow.pop %v411
    %v413 = vadd.f32 %v412, 1.0
    %v414 = vrcp.pop %v413
    %v415 = vmul.f32 1.0, %v414
    %v416 = vtanh.pop %v409
    %v417 = vmul.f32 %v415, %v291
    %419 = vrot.lane.b32.xlu0 %v416, 64
    %v420 = vpop.permute.xlu0 %419
    %v422 = vmul.f32 %v415, %v420
    %424 = vrot.lane.b32.xlu0 %v422, 32
    %v425 = vpop.permute.xlu0 %424
    %v427 = vadd.f32 %v417, %v425
    %v428 = vtanh.pop %v427
    %430 = vrot.lane.b32.xlu0 %v428, 64
    %v431 = vpop.permute.xlu0 %430
    %v433 = vmul.f32 %v415, %v431
    %v434 = vpack.c.bf16 %v433, %v433
    %v437 = vunpack.c.l.s4 1966171168
    %v438 = vunpack.c.0.s8 %v437
    %v439 = vlaneseq
    %v440 = vshrl.u32 %v439, 7
    %v441 = vsub.s32 %v438, %v440
    %v442 = vrot.slane %v434, %v441
    %v444 = vunpack.c.l.s4 1966171168
    %v445 = vunpack.c.0.s8 %v444
    %v446 = vlaneseq
    %v447 = vshrl.u32 %v446, 7
    %v448 = vsub.s32 %v445, %v447
    %v449 = vrot.slane %v442, %v448
    %450 = vrot.lane.b32.xlu0 %v449, 32
    %v451 = vpop.permute.xlu0 %450
    %453 = vst.msk [vmem:[#allocation2] sm:$0x1] %vm138, %v451
    %v454 = vld [vmem:[#allocation2] sm:$0x1]
    %v456 = vsel %vm181, %v454, 0
    %458 = vmatprep.subr.bf16.mxu0 0
    %459 = vmatpush1.bf16.msra.mxu0 0
    %460 = vmatprep.subr.bf16.mxu0 0
    %461 = vmatpush1.bf16.msra.mxu0 0
    %462 = vmatprep.subr.bf16.mxu0 0
    %463 = vmatpush1.bf16.msra.mxu0 0
    %464 = vmatprep.subr.bf16.mxu0 0
    %465 = vmatpush1.bf16.msra.mxu0 0
    %466 = vmatprep.subr.bf16.mxu0 %v172
    %467 = vmatpush1.bf16.msra.mxu0 %v171
    %468 = vmatprep.subr.bf16.mxu0 %v170
    %469 = vmatpush1.bf16.msra.mxu0 %v169
    %470 = vmatprep.subr.bf16.mxu0 %v168
    %471 = vmatpush1.bf16.msra.mxu0 %v167
    %472 = vmatprep.subr.bf16.mxu0 %v166
    %473 = vmatpush1.bf16.msra.mxu0 %v165
    %474 = vmatprep.subr.bf16.mxu0 0
    %475 = vmatpush2.bf16.msra.mxu0 0
    %476 = vmatprep.subr.bf16.mxu0 0
    %477 = vmatpush2.bf16.msra.mxu0 0
    %478 = vmatprep.subr.bf16.mxu0 0
    %479 = vmatpush2.bf16.msra.mxu0 0
    %480 = vmatprep.subr.bf16.mxu0 0
    %481 = vmatpush2.bf16.msra.mxu0 0
    %482 = vmatprep.subr.bf16.mxu0 0
    %483 = vmatpush2.bf16.msra.mxu0 0
    %484 = vmatprep.subr.bf16.mxu0 0
    %485 = vmatpush2.bf16.msra.mxu0 0
    %486 = vmatprep.subr.bf16.mxu0 0
    %487 = vmatpush2.bf16.msra.mxu0 0
    %488 = vmatprep.subr.bf16.mxu0 0
    %489 = vmatpush2.bf16.msra.mxu0 0
    %490 = vmatprep.mubr.bf16.mxu0 0
    %491 = vmatmul.mubr.bf16.gmra.mxu0 %v456
    %v492 = vpop.f32.mrf.mxu0
    %v493 = vadd.f32 0.0, %v492
    %v494 = vpop.f32.mrf.mxu0
    %v495 = vadd.f32 0.0, %v494
    %v496 = vpop.f32.mrf.mxu0
    %v497 = vpop.f32.mrf.mxu0
    %498 = vdwg.mxu0
    %v499 = vadd.f32 %v495, %v89
    %v500 = vxor.u32 %v499, 2147483648
    %v501 = vmul.f32 %v500, 1.442695
    %v502 = vpow.pop %v501
    %v503 = vadd.f32 %v502, 1.0
    %v504 = vrcp.pop %v503
    %v505 = vmul.f32 1.0, %v504
    %v506 = vtanh.pop %v499
    %v507 = vmul.f32 %v505, %v381
    %509 = vrot.lane.b32.xlu0 %v506, 64
    %v510 = vpop.permute.xlu0 %509
    %v512 = vmul.f32 %v505, %v510
    %514 = vrot.lane.b32.xlu0 %v512, 32
    %v515 = vpop.permute.xlu0 %514
    %v517 = vadd.f32 %v507, %v515
    %v518 = vtanh.pop %v517
    %520 = vrot.lane.b32.xlu0 %v518, 64
    %v521 = vpop.permute.xlu0 %520
    %v523 = vmul.f32 %v505, %v521
    %v524 = vpack.c.bf16 %v523, %v523
    %v527 = vunpack.c.l.s4 1966171168
    %v528 = vunpack.c.0.s8 %v527
    %v529 = vlaneseq
    %v530 = vshrl.u32 %v529, 7
    %v531 = vsub.s32 %v528, %v530
    %v532 = vrot.slane %v524, %v531
    %v534 = vunpack.c.l.s4 1966171168
    %v535 = vunpack.c.0.s8 %v534
    %v536 = vlaneseq
    %v537 = vshrl.u32 %v536, 7
    %v538 = vsub.s32 %v535, %v537
    %v539 = vrot.slane %v532, %v538
    %540 = vrot.lane.b32.xlu0 %v539, 64
    %v541 = vpop.permute.xlu0 %540
    %543 = vst.msk [vmem:[#allocation2] sm:$0x1] %vm270, %v541
    %v544 = vld [vmem:[#allocation6 + $0x6] sm:$0x3]
    %v545 = vadd.f32 %v544, %v493
    %v546 = vxor.u32 %v545, 2147483648
    %v547 = vmul.f32 %v546, 1.442695
    %v548 = vpow.pop %v547
    %v549 = vadd.f32 %v548, 1.0
    %v550 = vrcp.pop %v549
    %v551 = vmul.f32 1.0, %v550
    %v552 = vtanh.pop %v545
    %v553 = vmul.f32 %v551, %v427
    %555 = vrot.lane.b32.xlu0 %v552, 64
    %v556 = vpop.permute.xlu0 %555
    %v558 = vmul.f32 %v551, %v556
    %560 = vrot.lane.b32.xlu0 %v558, 32
    %v561 = vpop.permute.xlu0 %560
    %v563 = vadd.f32 %v553, %v561
    %v564 = vtanh.pop %v563
    %566 = vrot.lane.b32.xlu0 %v564, 64
    %v567 = vpop.permute.xlu0 %566
    %v569 = vmul.f32 %v551, %v567
    %v570 = vpack.c.bf16 %v569, %v569
    %v573 = vunpack.c.l.s4 1966171168
    %v574 = vunpack.c.0.s8 %v573
    %v575 = vlaneseq
    %v576 = vshrl.u32 %v575, 7
    %v577 = vsub.s32 %v574, %v576
    %v578 = vrot.slane %v570, %v577
    %v580 = vunpack.c.l.s4 1966171168
    %v581 = vunpack.c.0.s8 %v580
    %v582 = vlaneseq
    %v583 = vshrl.u32 %v582, 7
    %v584 = vsub.s32 %v581, %v583
    %v585 = vrot.slane %v578, %v584
    %586 = vrot.lane.b32.xlu0 %v585, 32
    %v587 = vpop.permute.xlu0 %586
    %589 = vst.msk [vmem:[#allocation2] sm:$0x1] %vm138, %v587
    %v590 = vld [vmem:[#allocation2] sm:$0x1]
    %v592 = vsel %vm181, %v590, 0
    %594 = vmatprep.subr.bf16.mxu0 0
    %595 = vmatpush1.bf16.msra.mxu0 0
    %596 = vmatprep.subr.bf16.mxu0 0
    %597 = vmatpush1.bf16.msra.mxu0 0
    %598 = vmatprep.subr.bf16.mxu0 0
    %599 = vmatpush1.bf16.msra.mxu0 0
    %600 = vmatprep.subr.bf16.mxu0 0
    %601 = vmatpush1.bf16.msra.mxu0 0
    %602 = vmatprep.subr.bf16.mxu0 %v172
    %603 = vmatpush1.bf16.msra.mxu0 %v171
    %604 = vmatprep.subr.bf16.mxu0 %v170
    %605 = vmatpush1.bf16.msra.mxu0 %v169
    %606 = vmatprep.subr.bf16.mxu0 %v168
    %607 = vmatpush1.bf16.msra.mxu0 %v167
    %608 = vmatprep.subr.bf16.mxu0 %v166
    %609 = vmatpush1.bf16.msra.mxu0 %v165
    %610 = vmatprep.subr.bf16.mxu0 0
    %611 = vmatpush2.bf16.msra.mxu0 0
    %612 = vmatprep.subr.bf16.mxu0 0
    %613 = vmatpush2.bf16.msra.mxu0 0
    %614 = vmatprep.subr.bf16.mxu0 0
    %615 = vmatpush2.bf16.msra.mxu0 0
    %616 = vmatprep.subr.bf16.mxu0 0
    %617 = vmatpush2.bf16.msra.mxu0 0
    %618 = vmatprep.subr.bf16.mxu0 0
    %619 = vmatpush2.bf16.msra.mxu0 0
    %620 = vmatprep.subr.bf16.mxu0 0
    %621 = vmatpush2.bf16.msra.mxu0 0
    %622 = vmatprep.subr.bf16.mxu0 0
    %623 = vmatpush2.bf16.msra.mxu0 0
    %624 = vmatprep.subr.bf16.mxu0 0
    %625 = vmatpush2.bf16.msra.mxu0 0
    %626 = vmatprep.mubr.bf16.mxu0 0
    %627 = vmatmul.mubr.bf16.gmra.mxu0 %v592
    %v628 = vpop.f32.mrf.mxu0
    %v629 = vadd.f32 0.0, %v628
    %v630 = vpop.f32.mrf.mxu0
    %v631 = vadd.f32 0.0, %v630
    %v632 = vpop.f32.mrf.mxu0
    %v633 = vpop.f32.mrf.mxu0
    %634 = vdwg.mxu0
    %v635 = vadd.f32 %v631, %v89
    %v636 = vxor.u32 %v635, 2147483648
    %v637 = vmul.f32 %v636, 1.442695
    %v638 = vpow.pop %v637
    %v639 = vadd.f32 %v638, 1.0
    %v640 = vrcp.pop %v639
    %v641 = vmul.f32 1.0, %v640
    %v642 = vtanh.pop %v635
    %v643 = vmul.f32 %v641, %v517
    %645 = vrot.lane.b32.xlu0 %v642, 64
    %v646 = vpop.permute.xlu0 %645
    %v648 = vmul.f32 %v641, %v646
    %650 = vrot.lane.b32.xlu0 %v648, 32
    %v651 = vpop.permute.xlu0 %650
    %v653 = vadd.f32 %v643, %v651
    %v654 = vtanh.pop %v653
    %656 = vrot.lane.b32.xlu0 %v654, 64
    %v657 = vpop.permute.xlu0 %656
    %v659 = vmul.f32 %v641, %v657
    %v660 = vpack.c.bf16 %v659, %v659
    %v663 = vunpack.c.l.s4 1966171168
    %v664 = vunpack.c.0.s8 %v663
    %v665 = vlaneseq
    %v666 = vshrl.u32 %v665, 7
    %v667 = vsub.s32 %v664, %v666
    %v668 = vrot.slane %v660, %v667
    %v670 = vunpack.c.l.s4 1966171168
    %v671 = vunpack.c.0.s8 %v670
    %v672 = vlaneseq
    %v673 = vshrl.u32 %v672, 7
    %v674 = vsub.s32 %v671, %v673
    %v675 = vrot.slane %v668, %v674
    %676 = vrot.lane.b32.xlu0 %v675, 64
    %v677 = vpop.permute.xlu0 %676
    %679 = vst.msk [vmem:[#allocation2] sm:$0x1] %vm270, %v677
    %v680 = vld [vmem:[#allocation6 + $0x8] sm:$0x3]
    %v681 = vadd.f32 %v680, %v629
    %v682 = vxor.u32 %v681, 2147483648
    %v683 = vmul.f32 %v682, 1.442695
    %v684 = vpow.pop %v683
    %v685 = vadd.f32 %v684, 1.0
    %v686 = vrcp.pop %v685
    %v687 = vmul.f32 1.0, %v686
    %v688 = vtanh.pop %v681
    %v689 = vmul.f32 %v687, %v563
    %691 = vrot.lane.b32.xlu0 %v688, 64
    %v692 = vpop.permute.xlu0 %691
    %v694 = vmul.f32 %v687, %v692
    %696 = vrot.lane.b32.xlu0 %v694, 32
    %v697 = vpop.permute.xlu0 %696
    %v699 = vadd.f32 %v689, %v697
    %v700 = vtanh.pop %v699
    %702 = vrot.lane.b32.xlu0 %v700, 64
    %v703 = vpop.permute.xlu0 %702
    %v705 = vmul.f32 %v687, %v703
    %v706 = vpack.c.bf16 %v705, %v705
    %v709 = vunpack.c.l.s4 1966171168
    %v710 = vunpack.c.0.s8 %v709
    %v711 = vlaneseq
    %v712 = vshrl.u32 %v711, 7
    %v713 = vsub.s32 %v710, %v712
    %v714 = vrot.slane %v706, %v713
    %v716 = vunpack.c.l.s4 1966171168
    %v717 = vunpack.c.0.s8 %v716
    %v718 = vlaneseq
    %v719 = vshrl.u32 %v718, 7
    %v720 = vsub.s32 %v717, %v719
    %v721 = vrot.slane %v714, %v720
    %722 = vrot.lane.b32.xlu0 %v721, 32
    %v723 = vpop.permute.xlu0 %722
    %725 = vst.msk [vmem:[#allocation2] sm:$0x1] %vm138, %v723
    %v726 = vld [vmem:[#allocation2] sm:$0x1]
    %v728 = vsel %vm181, %v726, 0
    %730 = vmatprep.subr.bf16.mxu0 0
    %731 = vmatpush1.bf16.msra.mxu0 0
    %732 = vmatprep.subr.bf16.mxu0 0
    %733 = vmatpush1.bf16.msra.mxu0 0
    %734 = vmatprep.subr.bf16.mxu0 0
    %735 = vmatpush1.bf16.msra.mxu0 0
    %736 = vmatprep.subr.bf16.mxu0 0
    %737 = vmatpush1.bf16.msra.mxu0 0
    %738 = vmatprep.subr.bf16.mxu0 %v172
    %739 = vmatpush1.bf16.msra.mxu0 %v171
    %740 = vmatprep.subr.bf16.mxu0 %v170
    %741 = vmatpush1.bf16.msra.mxu0 %v169
    %742 = vmatprep.subr.bf16.mxu0 %v168
    %743 = vmatpush1.bf16.msra.mxu0 %v167
    %744 = vmatprep.subr.bf16.mxu0 %v166
    %745 = vmatpush1.bf16.msra.mxu0 %v165
    %746 = vmatprep.subr.bf16.mxu0 0
    %747 = vmatpush2.bf16.msra.mxu0 0
    %748 = vmatprep.subr.bf16.mxu0 0
    %749 = vmatpush2.bf16.msra.mxu0 0
    %750 = vmatprep.subr.bf16.mxu0 0
    %751 = vmatpush2.bf16.msra.mxu0 0
    %752 = vmatprep.subr.bf16.mxu0 0
    %753 = vmatpush2.bf16.msra.mxu0 0
    %754 = vmatprep.subr.bf16.mxu0 0
    %755 = vmatpush2.bf16.msra.mxu0 0
    %756 = vmatprep.subr.bf16.mxu0 0
    %757 = vmatpush2.bf16.msra.mxu0 0
    %758 = vmatprep.subr.bf16.mxu0 0
    %759 = vmatpush2.bf16.msra.mxu0 0
    %760 = vmatprep.subr.bf16.mxu0 0
    %761 = vmatpush2.bf16.msra.mxu0 0
    %762 = vmatprep.mubr.bf16.mxu0 0
    %763 = vmatmul.mubr.bf16.gmra.mxu0 %v728
    %v764 = vpop.f32.mrf.mxu0
    %v765 = vadd.f32 0.0, %v764
    %v766 = vpop.f32.mrf.mxu0
    %v767 = vadd.f32 0.0, %v766
    %v768 = vpop.f32.mrf.mxu0
    %v769 = vpop.f32.mrf.mxu0
    %770 = vdwg.mxu0
    %v771 = vadd.f32 %v767, %v89
    %v772 = vxor.u32 %v771, 2147483648
    %v773 = vmul.f32 %v772, 1.442695
    %v774 = vpow.pop %v773
    %v775 = vadd.f32 %v774, 1.0
    %v776 = vrcp.pop %v775
    %v777 = vmul.f32 1.0, %v776
    %v778 = vtanh.pop %v771
    %v779 = vmul.f32 %v777, %v653
    %781 = vrot.lane.b32.xlu0 %v778, 64
    %v782 = vpop.permute.xlu0 %781
    %v784 = vmul.f32 %v777, %v782
    %786 = vrot.lane.b32.xlu0 %v784, 32
    %v787 = vpop.permute.xlu0 %786
    %v789 = vadd.f32 %v779, %v787
    %v790 = vtanh.pop %v789
    %792 = vrot.lane.b32.xlu0 %v790, 64
    %v793 = vpop.permute.xlu0 %792
    %v795 = vmul.f32 %v777, %v793
    %v796 = vpack.c.bf16 %v795, %v795
    %v799 = vunpack.c.l.s4 1966171168
    %v800 = vunpack.c.0.s8 %v799
    %v801 = vlaneseq
    %v802 = vshrl.u32 %v801, 7
    %v803 = vsub.s32 %v800, %v802
    %v804 = vrot.slane %v796, %v803
    %v806 = vunpack.c.l.s4 1966171168
    %v807 = vunpack.c.0.s8 %v806
    %v808 = vlaneseq
    %v809 = vshrl.u32 %v808, 7
    %v810 = vsub.s32 %v807, %v809
    %v811 = vrot.slane %v804, %v810
    %812 = vrot.lane.b32.xlu0 %v811, 64
    %v813 = vpop.permute.xlu0 %812
    %815 = vst.msk [vmem:[#allocation2] sm:$0x1] %vm270, %v813
    %v816 = vld [vmem:[#allocation6 + $0xa] sm:$0x3]
    %v817 = vadd.f32 %v816, %v765
    %v818 = vxor.u32 %v817, 2147483648
    %v819 = vmul.f32 %v818, 1.442695
    %v820 = vpow.pop %v819
    %v821 = vadd.f32 %v820, 1.0
    %v822 = vrcp.pop %v821
    %v823 = vmul.f32 1.0, %v822
    %v824 = vtanh.pop %v817
    %v825 = vmul.f32 %v823, %v699
    %827 = vrot.lane.b32.xlu0 %v824, 64
    %v828 = vpop.permute.xlu0 %827
    %v830 = vmul.f32 %v823, %v828
    %832 = vrot.lane.b32.xlu0 %v830, 32
    %v833 = vpop.permute.xlu0 %832
    %v835 = vadd.f32 %v825, %v833
    %v836 = vtanh.pop %v835
    %838 = vrot.lane.b32.xlu0 %v836, 64
    %v839 = vpop.permute.xlu0 %838
    %v841 = vmul.f32 %v823, %v839
    %v842 = vpack.c.bf16 %v841, %v841
    %v845 = vunpack.c.l.s4 1966171168
    %v846 = vunpack.c.0.s8 %v845
    %v847 = vlaneseq
    %v848 = vshrl.u32 %v847, 7
    %v849 = vsub.s32 %v846, %v848
    %v850 = vrot.slane %v842, %v849
    %v852 = vunpack.c.l.s4 1966171168
    %v853 = vunpack.c.0.s8 %v852
    %v854 = vlaneseq
    %v855 = vshrl.u32 %v854, 7
    %v856 = vsub.s32 %v853, %v855
    %v857 = vrot.slane %v850, %v856
    %858 = vrot.lane.b32.xlu0 %v857, 32
    %v859 = vpop.permute.xlu0 %858
    %861 = vst.msk [vmem:[#allocation2] sm:$0x1] %vm138, %v859
    %v862 = vld [vmem:[#allocation2] sm:$0x1]
    %v864 = vsel %vm181, %v862, 0
    %866 = vmatprep.subr.bf16.mxu0 0
    %867 = vmatpush1.bf16.msra.mxu0 0
    %868 = vmatprep.subr.bf16.mxu0 0
    %869 = vmatpush1.bf16.msra.mxu0 0
    %870 = vmatprep.subr.bf16.mxu0 0
    %871 = vmatpush1.bf16.msra.mxu0 0
    %872 = vmatprep.subr.bf16.mxu0 0
    %873 = vmatpush1.bf16.msra.mxu0 0
    %874 = vmatprep.subr.bf16.mxu0 %v172
    %875 = vmatpush1.bf16.msra.mxu0 %v171
    %876 = vmatprep.subr.bf16.mxu0 %v170
    %877 = vmatpush1.bf16.msra.mxu0 %v169
    %878 = vmatprep.subr.bf16.mxu0 %v168
    %879 = vmatpush1.bf16.msra.mxu0 %v167
    %880 = vmatprep.subr.bf16.mxu0 %v166
    %881 = vmatpush1.bf16.msra.mxu0 %v165
    %882 = vmatprep.subr.bf16.mxu0 0
    %883 = vmatpush2.bf16.msra.mxu0 0
    %884 = vmatprep.subr.bf16.mxu0 0
    %885 = vmatpush2.bf16.msra.mxu0 0
    %886 = vmatprep.subr.bf16.mxu0 0
    %887 = vmatpush2.bf16.msra.mxu0 0
    %888 = vmatprep.subr.bf16.mxu0 0
    %889 = vmatpush2.bf16.msra.mxu0 0
    %890 = vmatprep.subr.bf16.mxu0 0
    %891 = vmatpush2.bf16.msra.mxu0 0
    %892 = vmatprep.subr.bf16.mxu0 0
    %893 = vmatpush2.bf16.msra.mxu0 0
    %894 = vmatprep.subr.bf16.mxu0 0
    %895 = vmatpush2.bf16.msra.mxu0 0
    %896 = vmatprep.subr.bf16.mxu0 0
    %897 = vmatpush2.bf16.msra.mxu0 0
    %898 = vmatprep.mubr.bf16.mxu0 0
    %899 = vmatmul.mubr.bf16.gmra.mxu0 %v864
    %v900 = vpop.f32.mrf.mxu0
    %v901 = vadd.f32 0.0, %v900
    %v902 = vpop.f32.mrf.mxu0
    %v903 = vadd.f32 0.0, %v902
    %v904 = vpop.f32.mrf.mxu0
    %v905 = vpop.f32.mrf.mxu0
    %906 = vdwg.mxu0
    %v907 = vadd.f32 %v903, %v89
    %v908 = vxor.u32 %v907, 2147483648
    %v909 = vmul.f32 %v908, 1.442695
    %v910 = vpow.pop %v909
    %v911 = vadd.f32 %v910, 1.0
    %v912 = vrcp.pop %v911
    %v913 = vmul.f32 1.0, %v912
    %v914 = vtanh.pop %v907
    %v915 = vmul.f32 %v913, %v789
    %917 = vrot.lane.b32.xlu0 %v914, 64
    %v918 = vpop.permute.xlu0 %917
    %v920 = vmul.f32 %v913, %v918
    %922 = vrot.lane.b32.xlu0 %v920, 32
    %v923 = vpop.permute.xlu0 %922
    %v925 = vadd.f32 %v915, %v923
    %v926 = vtanh.pop %v925
    %928 = vrot.lane.b32.xlu0 %v926, 64
    %v929 = vpop.permute.xlu0 %928
    %v931 = vmul.f32 %v913, %v929
    %v932 = vpack.c.bf16 %v931, %v931
    %v935 = vunpack.c.l.s4 1966171168
    %v936 = vunpack.c.0.s8 %v935
    %v937 = vlaneseq
    %v938 = vshrl.u32 %v937, 7
    %v939 = vsub.s32 %v936, %v938
    %v940 = vrot.slane %v932, %v939
    %v942 = vunpack.c.l.s4 1966171168
    %v943 = vunpack.c.0.s8 %v942
    %v944 = vlaneseq
    %v945 = vshrl.u32 %v944, 7
    %v946 = vsub.s32 %v943, %v945
    %v947 = vrot.slane %v940, %v946
    %948 = vrot.lane.b32.xlu0 %v947, 64
    %v949 = vpop.permute.xlu0 %948
    %951 = vst.msk [vmem:[#allocation2] sm:$0x1] %vm270, %v949
    %v952 = vld [vmem:[#allocation6 + $0xc] sm:$0x3]
    %v953 = vadd.f32 %v952, %v901
    %v954 = vxor.u32 %v953, 2147483648
    %v955 = vmul.f32 %v954, 1.442695
    %v956 = vpow.pop %v955
    %v957 = vadd.f32 %v956, 1.0
    %v958 = vrcp.pop %v957
    %v959 = vmul.f32 1.0, %v958
    %v960 = vtanh.pop %v953
    %v961 = vmul.f32 %v959, %v835
    %963 = vrot.lane.b32.xlu0 %v960, 64
    %v964 = vpop.permute.xlu0 %963
    %v966 = vmul.f32 %v959, %v964
    %968 = vrot.lane.b32.xlu0 %v966, 32
    %v969 = vpop.permute.xlu0 %968
    %v971 = vadd.f32 %v961, %v969
    %v972 = vtanh.pop %v971
    %974 = vrot.lane.b32.xlu0 %v972, 64
    %v975 = vpop.permute.xlu0 %974
    %v977 = vmul.f32 %v959, %v975
    %v978 = vpack.c.bf16 %v977, %v977
    %v981 = vunpack.c.l.s4 1966171168
    %v982 = vunpack.c.0.s8 %v981
    %v983 = vlaneseq
    %v984 = vshrl.u32 %v983, 7
    %v985 = vsub.s32 %v982, %v984
    %v986 = vrot.slane %v978, %v985
    %v988 = vunpack.c.l.s4 1966171168
    %v989 = vunpack.c.0.s8 %v988
    %v990 = vlaneseq
    %v991 = vshrl.u32 %v990, 7
    %v992 = vsub.s32 %v989, %v991
    %v993 = vrot.slane %v986, %v992
    %994 = vrot.lane.b32.xlu0 %v993, 32
    %v995 = vpop.permute.xlu0 %994
    %997 = vst.msk [vmem:[#allocation2] sm:$0x1] %vm138, %v995
    %v998 = vld [vmem:[#allocation2] sm:$0x1]
    %v1000 = vsel %vm181, %v998, 0
    %1002 = vmatprep.subr.bf16.mxu0 0
    %1003 = vmatpush1.bf16.msra.mxu0 0
    %1004 = vmatprep.subr.bf16.mxu0 0
    %1005 = vmatpush1.bf16.msra.mxu0 0
    %1006 = vmatprep.subr.bf16.mxu0 0
    %1007 = vmatpush1.bf16.msra.mxu0 0
    %1008 = vmatprep.subr.bf16.mxu0 0
    %1009 = vmatpush1.bf16.msra.mxu0 0
    %1010 = vmatprep.subr.bf16.mxu0 %v172
    %1011 = vmatpush1.bf16.msra.mxu0 %v171
    %1012 = vmatprep.subr.bf16.mxu0 %v170
    %1013 = vmatpush1.bf16.msra.mxu0 %v169
    %1014 = vmatprep.subr.bf16.mxu0 %v168
    %1015 = vmatpush1.bf16.msra.mxu0 %v167
    %1016 = vmatprep.subr.bf16.mxu0 %v166
    %1017 = vmatpush1.bf16.msra.mxu0 %v165
    %1018 = vmatprep.subr.bf16.mxu0 0
    %1019 = vmatpush2.bf16.msra.mxu0 0
    %1020 = vmatprep.subr.bf16.mxu0 0
    %1021 = vmatpush2.bf16.msra.mxu0 0
    %1022 = vmatprep.subr.bf16.mxu0 0
    %1023 = vmatpush2.bf16.msra.mxu0 0
    %1024 = vmatprep.subr.bf16.mxu0 0
    %1025 = vmatpush2.bf16.msra.mxu0 0
    %1026 = vmatprep.subr.bf16.mxu0 0
    %1027 = vmatpush2.bf16.msra.mxu0 0
    %1028 = vmatprep.subr.bf16.mxu0 0
    %1029 = vmatpush2.bf16.msra.mxu0 0
    %1030 = vmatprep.subr.bf16.mxu0 0
    %1031 = vmatpush2.bf16.msra.mxu0 0
    %1032 = vmatprep.subr.bf16.mxu0 0
    %1033 = vmatpush2.bf16.msra.mxu0 0
    %1034 = vmatprep.mubr.bf16.mxu0 0
    %1035 = vmatmul.mubr.bf16.gmra.mxu0 %v1000
    %v1036 = vpop.f32.mrf.mxu0
    %v1037 = vadd.f32 0.0, %v1036
    %v1038 = vpop.f32.mrf.mxu0
    %v1039 = vadd.f32 0.0, %v1038
    %v1040 = vpop.f32.mrf.mxu0
    %v1041 = vpop.f32.mrf.mxu0
    %1042 = vdwg.mxu0
    %v1043 = vadd.f32 %v1039, %v89
    %v1044 = vxor.u32 %v1043, 2147483648
    %v1045 = vmul.f32 %v1044, 1.442695
    %v1046 = vpow.pop %v1045
    %v1047 = vadd.f32 %v1046, 1.0
    %v1048 = vrcp.pop %v1047
    %v1049 = vmul.f32 1.0, %v1048
    %v1050 = vtanh.pop %v1043
    %v1051 = vmul.f32 %v1049, %v925
    %1053 = vrot.lane.b32.xlu0 %v1050, 64
    %v1054 = vpop.permute.xlu0 %1053
    %v1056 = vmul.f32 %v1049, %v1054
    %1058 = vrot.lane.b32.xlu0 %v1056, 32
    %v1059 = vpop.permute.xlu0 %1058
    %v1061 = vadd.f32 %v1051, %v1059
    %v1062 = vtanh.pop %v1061
    %1064 = vrot.lane.b32.xlu0 %v1062, 64
    %v1065 = vpop.permute.xlu0 %1064
    %v1067 = vmul.f32 %v1049, %v1065
    %v1068 = vpack.c.bf16 %v1067, %v1067
    %v1071 = vunpack.c.l.s4 1966171168
    %v1072 = vunpack.c.0.s8 %v1071
    %v1073 = vlaneseq
    %v1074 = vshrl.u32 %v1073, 7
    %v1075 = vsub.s32 %v1072, %v1074
    %v1076 = vrot.slane %v1068, %v1075
    %v1078 = vunpack.c.l.s4 1966171168
    %v1079 = vunpack.c.0.s8 %v1078
    %v1080 = vlaneseq
    %v1081 = vshrl.u32 %v1080, 7
    %v1082 = vsub.s32 %v1079, %v1081
    %v1083 = vrot.slane %v1076, %v1082
    %1084 = vrot.lane.b32.xlu0 %v1083, 64
    %v1085 = vpop.permute.xlu0 %1084
    %1087 = vst.msk [vmem:[#allocation2] sm:$0x1] %vm270, %v1085
    %v1088 = vld [vmem:[#allocation6 + $0xe] sm:$0x3]
    %v1089 = vadd.f32 %v1088, %v1037
    %v1090 = vxor.u32 %v1089, 2147483648
    %v1091 = vmul.f32 %v1090, 1.442695
    %v1092 = vpow.pop %v1091
    %v1093 = vadd.f32 %v1092, 1.0
    %v1094 = vrcp.pop %v1093
    %v1095 = vmul.f32 1.0, %v1094
    %v1096 = vtanh.pop %v1089
    %v1097 = vmul.f32 %v1095, %v971
    %1099 = vrot.lane.b32.xlu0 %v1096, 64
    %v1100 = vpop.permute.xlu0 %1099
    %v1102 = vmul.f32 %v1095, %v1100
    %1104 = vrot.lane.b32.xlu0 %v1102, 32
    %v1105 = vpop.permute.xlu0 %1104
    %v1107 = vadd.f32 %v1097, %v1105
    %v1108 = vtanh.pop %v1107
    %1110 = vrot.lane.b32.xlu0 %v1108, 64
    %v1111 = vpop.permute.xlu0 %1110
    %v1113 = vmul.f32 %v1095, %v1111
    %v1114 = vpack.c.bf16 %v1113, %v1113
    %v1117 = vunpack.c.l.s4 1966171168
    %v1118 = vunpack.c.0.s8 %v1117
    %v1119 = vlaneseq
    %v1120 = vshrl.u32 %v1119, 7
    %v1121 = vsub.s32 %v1118, %v1120
    %v1122 = vrot.slane %v1114, %v1121
    %v1124 = vunpack.c.l.s4 1966171168
    %v1125 = vunpack.c.0.s8 %v1124
    %v1126 = vlaneseq
    %v1127 = vshrl.u32 %v1126, 7
    %v1128 = vsub.s32 %v1125, %v1127
    %v1129 = vrot.slane %v1122, %v1128
    %1130 = vrot.lane.b32.xlu0 %v1129, 32
    %v1131 = vpop.permute.xlu0 %1130
    %1133 = vst.msk [vmem:[#allocation2] sm:$0x1] %vm138, %v1131
    %v1134 = vld [vmem:[#allocation2] sm:$0x1]
    %v1136 = vsel %vm181, %v1134, 0
    %1138 = vmatprep.subr.bf16.mxu0 0
    %1139 = vmatpush1.bf16.msra.mxu0 0
    %1140 = vmatprep.subr.bf16.mxu0 0
    %1141 = vmatpush1.bf16.msra.mxu0 0
    %1142 = vmatprep.subr.bf16.mxu0 0
    %1143 = vmatpush1.bf16.msra.mxu0 0
    %1144 = vmatprep.subr.bf16.mxu0 0
    %1145 = vmatpush1.bf16.msra.mxu0 0
    %1146 = vmatprep.subr.bf16.mxu0 %v172
    %1147 = vmatpush1.bf16.msra.mxu0 %v171
    %1148 = vmatprep.subr.bf16.mxu0 %v170
    %1149 = vmatpush1.bf16.msra.mxu0 %v169
    %1150 = vmatprep.subr.bf16.mxu0 %v168
    %1151 = vmatpush1.bf16.msra.mxu0 %v167
    %1152 = vmatprep.subr.bf16.mxu0 %v166
    %1153 = vmatpush1.bf16.msra.mxu0 %v165
    %1154 = vmatprep.subr.bf16.mxu0 0
    %1155 = vmatpush2.bf16.msra.mxu0 0
    %1156 = vmatprep.subr.bf16.mxu0 0
    %1157 = vmatpush2.bf16.msra.mxu0 0
    %1158 = vmatprep.subr.bf16.mxu0 0
    %1159 = vmatpush2.bf16.msra.mxu0 0
    %1160 = vmatprep.subr.bf16.mxu0 0
    %1161 = vmatpush2.bf16.msra.mxu0 0
    %1162 = vmatprep.subr.bf16.mxu0 0
    %1163 = vmatpush2.bf16.msra.mxu0 0
    %1164 = vmatprep.subr.bf16.mxu0 0
    %1165 = vmatpush2.bf16.msra.mxu0 0
    %1166 = vmatprep.subr.bf16.mxu0 0
    %1167 = vmatpush2.bf16.msra.mxu0 0
    %1168 = vmatprep.subr.bf16.mxu0 0
    %1169 = vmatpush2.bf16.msra.mxu0 0
    %1170 = vmatprep.mubr.bf16.mxu0 0
    %1171 = vmatmul.mubr.bf16.gmra.mxu0 %v1136
    %v1172 = vpop.f32.mrf.mxu0
    %v1173 = vpop.f32.mrf.mxu0
    %v1174 = vadd.f32 0.0, %v1173
    %v1175 = vpop.f32.mrf.mxu0
    %v1176 = vpop.f32.mrf.mxu0
    %1177 = vdwg.mxu0
    %v1178 = vadd.f32 %v1174, %v89
    %v1179 = vxor.u32 %v1178, 2147483648
    %v1180 = vmul.f32 %v1179, 1.442695
    %v1181 = vpow.pop %v1180
    %v1182 = vadd.f32 %v1181, 1.0
    %v1183 = vrcp.pop %v1182
    %v1184 = vmul.f32 1.0, %v1183
    %v1185 = vtanh.pop %v1178
    %v1186 = vmul.f32 %v1184, %v1061
    %1188 = vrot.lane.b32.xlu0 %v1185, 64
    %v1189 = vpop.permute.xlu0 %1188
    %v1191 = vmul.f32 %v1184, %v1189
    %1193 = vrot.lane.b32.xlu0 %v1191, 32
    %v1194 = vpop.permute.xlu0 %1193
    %v1196 = vadd.f32 %v1186, %v1194
    %v1197 = vtanh.pop %v1196
    %1199 = vrot.lane.b32.xlu0 %v1197, 64
    %v1200 = vpop.permute.xlu0 %1199
    %v1202 = vmul.f32 %v1184, %v1200
    %v1203 = vpack.c.bf16 %v1202, %v1202
    %v1206 = vunpack.c.l.s4 1966171168
    %v1207 = vunpack.c.0.s8 %v1206
    %v1208 = vlaneseq
    %v1209 = vshrl.u32 %v1208, 7
    %v1210 = vsub.s32 %v1207, %v1209
    %v1211 = vrot.slane %v1203, %v1210
    %v1213 = vunpack.c.l.s4 1966171168
    %v1214 = vunpack.c.0.s8 %v1213
    %v1215 = vlaneseq
    %v1216 = vshrl.u32 %v1215, 7
    %v1217 = vsub.s32 %v1214, %v1216
    %v1218 = vrot.slane %v1211, %v1217
    %1219 = vrot.lane.b32.xlu0 %v1218, 64
    %v1220 = vpop.permute.xlu0 %1219
    %1222 = vst.msk [vmem:[#allocation2] sm:$0x1] %vm270, %v1220
    %v1223 = vld [vmem:[#allocation9] sm:$0xff]
    %v1224 = vld [vmem:[#allocation9 + $0x8] sm:$0xff]
    %v1225 = vld [vmem:[#allocation9 + $0x10] sm:$0xff]
    %v1226 = vld [vmem:[#allocation9 + $0x18] sm:$0xff]
    %v1227 = vld [vmem:[%s5] sm:$0x1]
    %v1229 = vlaneseq
    %v1230 = vshrl.u32 %v1229, 7
    %v1231 = vsub.s32 0, %v1230
    %v1232 = vrot.slane %v1227, %v1231
    %1235 = vrot.lane.b32.xlu0 %v1202, 32
    %v1236 = vpop.permute.xlu0 %1235
    %vm1237 = vcmask 261120
    %v1238 = vsel %vm1237, %v1236, 0
    %1240 = vmatprep.subr.mxu0 0.0
    %1241 = vmatpush1.msra.mxu0 0.0
    %1242 = vmatprep.subr.mxu0 0.0
    %1243 = vmatpush1.msra.mxu0 0.0
    %1244 = vmatprep.subr.mxu0 0.0
    %1245 = vmatpush1.msra.mxu0 0.0
    %1246 = vmatprep.subr.mxu0 0.0
    %1247 = vmatpush1.msra.mxu0 0.0
    %1248 = vmatprep.subr.mxu0 0.0
    %1249 = vmatpush1.msra.mxu0 0.0
    %1250 = vmatprep.subr.mxu0 0.0
    %1251 = vmatpush1.msra.mxu0 0.0
    %1252 = vmatprep.subr.mxu0 0.0
    %1253 = vmatpush1.msra.mxu0 0.0
    %1254 = vmatprep.subr.mxu0 0.0
    %1255 = vmatpush1.msra.mxu0 0.0
    %1256 = vmatprep.subr.mxu0 0.0
    %1257 = vmatpush1.msra.mxu0 0.0
    %1258 = vmatprep.subr.mxu0 0.0
    %1259 = vmatpush1.msra.mxu0 0.0
    %1260 = vmatprep.subr.mxu0 0.0
    %1261 = vmatpush1.msra.mxu0 0.0
    %1262 = vmatprep.subr.mxu0 0.0
    %1263 = vmatpush1.msra.mxu0 0.0
    %1264 = vmatprep.subr.mxu0 0.0
    %1265 = vmatpush1.msra.mxu0 %v1226
    %1266 = vmatprep.subr.mxu0 0.0
    %1267 = vmatpush1.msra.mxu0 %v1225
    %1268 = vmatprep.subr.mxu0 0.0
    %1269 = vmatpush1.msra.mxu0 %v1224
    %1270 = vmatprep.subr.mxu0 0.0
    %1271 = vmatpush1.msra.mxu0 %v1223
    %1272 = vmatprep.subr.mxu0 0.0
    %1273 = vmatpush2.msra.mxu0 0.0
    %1274 = vmatprep.subr.mxu0 0.0
    %1275 = vmatpush2.msra.mxu0 0.0
    %1276 = vmatprep.subr.mxu0 0.0
    %1277 = vmatpush2.msra.mxu0 0.0
    %1278 = vmatprep.subr.mxu0 0.0
    %1279 = vmatpush2.msra.mxu0 0.0
    %1280 = vmatprep.subr.mxu0 0.0
    %1281 = vmatpush2.msra.mxu0 0.0
    %1282 = vmatprep.subr.mxu0 0.0
    %1283 = vmatpush2.msra.mxu0 0.0
    %1284 = vmatprep.subr.mxu0 0.0
    %1285 = vmatpush2.msra.mxu0 0.0
    %1286 = vmatprep.subr.mxu0 0.0
    %1287 = vmatpush2.msra.mxu0 0.0
    %1288 = vmatprep.subr.mxu0 0.0
    %1289 = vmatpush2.msra.mxu0 0.0
    %1290 = vmatprep.subr.mxu0 0.0
    %1291 = vmatpush2.msra.mxu0 0.0
    %1292 = vmatprep.subr.mxu0 0.0
    %1293 = vmatpush2.msra.mxu0 0.0
    %1294 = vmatprep.subr.mxu0 0.0
    %1295 = vmatpush2.msra.mxu0 0.0
    %1296 = vmatprep.subr.mxu0 0.0
    %1297 = vmatpush2.msra.mxu0 0.0
    %1298 = vmatprep.subr.mxu0 0.0
    %1299 = vmatpush2.msra.mxu0 0.0
    %1300 = vmatprep.subr.mxu0 0.0
    %1301 = vmatpush2.msra.mxu0 0.0
    %1302 = vmatprep.subr.mxu0 0.0
    %1303 = vmatpush2.msra.mxu0 0.0
    %1304 = vmatprep.mubr.f32.mxu0 0.0
    %1305 = vmatmul.mubr.f32.gmra.mxu0 %v1238
    %v1306 = vpop.f32.mrf.mxu0
    %v1307 = vadd.f32 %v1232, %v1306
    %v1308 = vpop.f32.mrf.mxu0
    %1309 = vdwg.mxu0
    %v1310 = vxor.u32 %v1307, 2147483648
    %v1311 = vmul.f32 %v1310, 1.442695
    %v1312 = vpow.pop %v1311
    %v1313 = vadd.f32 %v1312, 1.0
    %v1314 = vrcp.pop %v1313
    %v1315 = vmul.f32 1.0, %v1314
    %v1316 = vadd.f32 %v1315, 0.5
    %v1317 = vsub.f32 0.0, %v1316
    %v1318 = vmul.f32 %v1317, 1.442695
    %v1319 = vpow.pop %v1318
    %1321 = vset.pattern.permute.xlu0 0
    %1322 = vperm.xlu0 %1321, %v1319
    %v1323 = vpop.permute.xlu0 %1322
    %v1325 = vmul.f32 %v1323, %v1307
    %1327 = vrot.lane.b32.xlu0 %v1325, 127
    %v1328 = vpop.permute.xlu0 %1327
    %1330 = vrot.lane.b32.xlu0 %v1325, 63
    %v1331 = vpop.permute.xlu0 %1330
    %v1333 = vsel %vm181, %v1328, %v1331
    %v1334 = vld [vmem:[#allocation3] sm:$0xff]
    %v1335 = vand.u32 2147483647, %v1334
    %v1337 = vcombine.low %v1333, %v1333
    %v1339 = vunpack.c.l.s4 1983009808
    %v1340 = vunpack.c.0.s8 %v1339
    %v1341 = vlaneseq
    %v1342 = vshrl.u32 %v1341, 7
    %v1343 = vsub.s32 %v1340, %v1342
    %v1344 = vrot.slane %v1337, %v1343
    %v1345 = vcombine.low %v1344, %v1344
    %v1347 = vmul.f32 %v1335, %v1345
    %1348 = vst [vmem:[#allocation11] sm:$0xff] %v1347
    // Predicated region
    $region42: #{tpu_custom_call.1} parent=1 // pred_check
      _
    $region43: #{tpu_custom_call.1} parent=1 // pred_check_branch
      %1350 = sbr.rel (0) target = $region45
    $region44: #{tpu_custom_call.1} parent=1 // pred_region
      %s1352 = ssub.s32 128, 128
      %1353 = vsyncadd [#allocation5], %s1352
      %s1355 = sshll.u32 [#allocation11], 4
      %s1356 = int_to_ptr.vmem [resolvable:$true] %s1355
      %1358 = dma.vmem_to_hbm [thread:$0]  %s1356, 128, %s6, [#allocation5]
    $region45: #{tpu_custom_call.1} parent=1 // pred_fallthru
      _
    // Predicated region
    $region46: #{tpu_custom_call.1} parent=1 // pred_check
      _
    $region47: #{tpu_custom_call.1} parent=1 // pred_check_branch
      %1360 = sbr.rel (0) target = $region49
    $region48: #{tpu_custom_call.1} parent=1 // pred_region
      %1361 = dma.done [#allocation5], 128
    $region49: #{tpu_custom_call.1} parent=1 // pred_fallthru
      _
    %1362 = vsyncpa [#allocation4], 1
    %1363 = vsyncpa [#allocation7], 1
    %1364 = vsyncpa [#allocation10], 1
    %1365 = vsyncpa [#allocation5], 1

</llo_original>
